<compile_context>
chip_gen: v7x
topology: tpu7x:2x2x1
jax: 0.10.0
libtpu: 0.0.40
codegen_flags: <defaults>
</compile_context>

<pallas_src>
import math
import functools

import jax
import jax.numpy as jnp
from jax import lax
from jax.experimental import pallas as pl
from jax.experimental.pallas import tpu as pltpu


def _self_attention_kernel(
    x_ref,        # (Bblk, S, D)   f32
    ln_g_ref,     # (1, D)         f32
    ln_b_ref,     # (1, D)         f32
    wqkv_ref,     # (D, 2*Dqk+D)   bf16   (wq pre-scaled by attn_scale)
    bqkv_ref,     # (1, 2*Dqk+D)   f32    (bq pre-scaled by attn_scale)
    wo_ref,       # (D, D)         bf16
    bo_ref,       # (1, D)         f32
    out_ref,      # (Bblk, S, D)   f32
    attn_ref,     # (Bblk, H, S, S) f32
    *,
    num_heads: int,
    qk_head_dim: int,
    v_head_dim: int,
    key_query_dim: int,
):
    bb, S, D = x_ref.shape
    dqk = key_query_dim

    x = x_ref[...]  # (Bblk, S, D) f32

    # ---- LayerNorm over last dim (eps = 1e-5), f32 ----
    mean = jnp.mean(x, axis=-1, keepdims=True)
    centered = x - mean
    var = jnp.mean(centered * centered, axis=-1, keepdims=True)
    xn = centered * lax.rsqrt(var + 1e-5)
    xn = xn * ln_g_ref[0] + ln_b_ref[0]

    # ---- fused Q/K/V projection: one wide MXU matmul over Bblk*S rows ----
    xn2 = xn.reshape(bb * S, D).astype(jnp.bfloat16)
    qkv = jnp.dot(xn2, wqkv_ref[...], preferred_element_type=jnp.float32)
    qkv = qkv + bqkv_ref[0]                        # (Bblk*S, 2*Dqk+D) f32

    # ---- split into head-batched tensors: (H*Bblk, S, hd), batch = (head, b) ----
    def split_heads(off, hd):
        parts = [
            qkv[:, off + h * hd: off + (h + 1) * hd].reshape(bb, S, hd)
            for h in range(num_heads)
        ]
        return jnp.stack(parts, axis=0).reshape(num_heads * bb, S, hd)

    q3 = split_heads(0, qk_head_dim).astype(jnp.bfloat16)        # scale already folded in
    k3 = split_heads(dqk, qk_head_dim).astype(jnp.bfloat16)
    v3 = split_heads(2 * dqk, v_head_dim).astype(jnp.bfloat16)

    # ---- head-batched scaled dot-product attention ----
    scores = jnp.einsum("bqd,bkd->bqk", q3, k3,
                        preferred_element_type=jnp.float32)      # (H*Bblk, S, S) f32
    s_max = jnp.max(scores, axis=-1, keepdims=True)
    e = jnp.exp(scores - s_max)
    denom = jnp.sum(e, axis=-1, keepdims=True)
    probs = e * pl.reciprocal(denom, approx=True)                # f32 probabilities

    # TODO(synk): attn_drop / drop are nn.Dropout -> identity in eval mode.

    # store attention maps as (Bblk, H, S, S)
    probs4 = probs.reshape(num_heads, bb, S, S)
    for h in range(num_heads):
        attn_ref[:, h, :, :] = probs4[h]

    ctx3 = jnp.einsum("bqk,bkd->bqd", probs.astype(jnp.bfloat16), v3,
                      preferred_element_type=jnp.float32)        # (H*Bblk, S, hd_v)
    ctx4 = ctx3.reshape(num_heads, bb, S, v_head_dim)
    ctx = jnp.concatenate([ctx4[h] for h in range(num_heads)], axis=-1)  # (Bblk, S, D)

    # ---- output projection + residual (residual uses pre-norm input) ----
    out = jnp.dot(ctx.reshape(bb * S, D).astype(jnp.bfloat16), wo_ref[...],
                  preferred_element_type=jnp.float32) + bo_ref[0]
    out_ref[...] = out.reshape(bb, S, D) + x


def _pick_block_b(B: int, cap: int = 8) -> int:
    """Largest divisor of B (<= cap) that still leaves >= 2 grid steps (v7x dual-TC)."""
    if B < 2:
        return max(B, 1)
    best = 1
    for d in range(1, min(B, cap) + 1):
        if B % d == 0 and (B // d) >= 2:
            best = d
    return best


def prepare_fused_params(params, num_heads):
    """One-time param prep: fuse wq|wk|wv, fold attn_scale into q, cast MXU weights to bf16."""
    D = params["wv"].shape[0]
    Dqk = params["wq"].shape[1]
    scale = math.sqrt(1.0 / (Dqk // num_heads))
    w_qkv = jnp.concatenate(
        [params["wq"] * scale, params["wk"], params["wv"]], axis=1)       # (D, 2*Dqk+D)
    b_qkv = jnp.concatenate(
        [params["bq"] * scale, params["bk"], params["bv"]], axis=1)       # (1, 2*Dqk+D)
    return {
        "ln_g": params["ln_g"],
        "ln_b": params["ln_b"],
        "w_qkv": w_qkv.astype(jnp.bfloat16),
        "b_qkv": b_qkv,                      # biases stay f32
        "wo": params["wo"].astype(jnp.bfloat16),
        "bo": params["bo"],
        "key_query_dim": int(Dqk),
    }


def self_attention_block(hidden, fused, *, num_heads, block_b=None):
    """hidden: (B, S, D) f32.  Returns (output (B,S,D), attn (B,H,S,S))."""
    B, S, D = hidden.shape
    Dqk = fused["key_query_dim"]
    F = 2 * Dqk + D
    hd_qk = Dqk // num_heads
    hd_v = D // num_heads

    if block_b is None:
        # For large real configs, re-derive block_b against VMEM (64 MiB on v7x).
        block_b = _pick_block_b(B)
    assert B % block_b == 0, "batch must be divisible by block_b"
    grid = (B // block_b,)

    kernel = functools.partial(
        _self_attention_kernel,
        num_heads=num_heads,
        qk_head_dim=hd_qk,
        v_head_dim=hd_v,
        key_query_dim=Dqk,
    )

    full = lambda b: (0, 0)  # weights: whole array every grid step

    flops = int(
        B * S * 2 * D * F                      # fused QKV projection
        + B * num_heads * S * S * 2 * hd_qk    # QK^T
        + B * num_heads * S * S * 2 * hd_v     # PV
        + B * S * 2 * D * D                    # output projection
        + B * S * D * 10                       # LayerNorm / bias / residual
    )
    transcendentals = int(B * num_heads * S * S + B * S + B * num_heads * S)
    bytes_accessed = int(
        4 * (B * S * D * 2 + B * num_heads * S * S)          # x in, out+attn writes
        + grid[0] * (2 * D * F + 2 * D * D + 4 * (F + 4 * D))  # weights/biases per step
    )

    out, attn = pl.pallas_call(
        kernel,
        out_shape=(
            jax.ShapeDtypeStruct((B, S, D), jnp.float32),
            jax.ShapeDtypeStruct((B, num_heads, S, S), jnp.float32),
        ),
        grid_spec=pltpu.PrefetchScalarGridSpec(
            num_scalar_prefetch=0,
            grid=grid,
            in_specs=[
                pl.BlockSpec((block_b, S, D), lambda b: (b, 0, 0)),   # hidden
                pl.BlockSpec((1, D), full),                           # ln gamma
                pl.BlockSpec((1, D), full),                           # ln beta
                pl.BlockSpec((D, F), full),                           # fused wqkv (bf16)
                pl.BlockSpec((1, F), full),                           # fused bqkv
                pl.BlockSpec((D, D), full),                           # wo (bf16)
                pl.BlockSpec((1, D), full),                           # bo
            ],
            out_specs=[
                pl.BlockSpec((block_b, S, D), lambda b: (b, 0, 0)),
                pl.BlockSpec((block_b, num_heads, S, S), lambda b: (b, 0, 0, 0)),
            ],
        ),
        compiler_params=pltpu.CompilerParams(
            dimension_semantics=("parallel",),
        ),
        cost_estimate=pl.CostEstimate(
            flops=flops,
            transcendentals=transcendentals,
            bytes_accessed=bytes_accessed,
        ),
    )(
        hidden,
        fused["ln_g"], fused["ln_b"],
        fused["w_qkv"], fused["b_qkv"],
        fused["wo"], fused["bo"],
    )
    return out, attn


def _reference(hidden, params, num_heads):
    """Pure-JAX f32 reference mirroring the PyTorch forward (eval mode)."""
    B, S, D = hidden.shape
    Dqk = params["wq"].shape[1]
    hd_qk = Dqk // num_heads
    hd_v = D // num_heads

    mean = jnp.mean(hidden, axis=-1, keepdims=True)
    var = jnp.mean((hidden - mean) ** 2, axis=-1, keepdims=True)
    xn = (hidden - mean) / jnp.sqrt(var + 1e-5)
    xn = xn * params["ln_g"][0] + params["ln_b"][0]

    q = xn @ params["wq"] + params["bq"][0]
    k = xn @ params["wk"] + params["bk"][0]
    v = xn @ params["wv"] + params["bv"][0]

    q = q.reshape(B, S, num_heads, hd_qk).transpose(0, 2, 1, 3)
    k = k.reshape(B, S, num_heads, hd_qk).transpose(0, 2, 1, 3)
    v = v.reshape(B, S, num_heads, hd_v).transpose(0, 2, 1, 3)

    attn = jnp.einsum("bhqd,bhkd->bhqk", q, k) * math.sqrt(1.0 / hd_qk)
    attn = jax.nn.softmax(attn, axis=-1)
    ctx = jnp.einsum("bhqk,bhkd->bhqd", attn, v)
    ctx = ctx.transpose(0, 2, 1, 3).reshape(B, S, D)
    out = ctx @ params["wo"] + params["bo"][0]
    return out + hidden, attn


def make_params(key, hidden_dim, key_query_dim):
    """Deterministic synthetic params; Linear weights stored (in, out)."""
    ks = jax.random.split(key, 10)
    sc = 0.05
    return {
        "ln_g": 1.0 + sc * jax.random.normal(ks[0], (1, hidden_dim), jnp.float32),
        "ln_b": sc * jax.random.normal(ks[1], (1, hidden_dim), jnp.float32),
        "wq": sc * jax.random.normal(ks[2], (hidden_dim, key_query_dim), jnp.float32),
        "bq": sc * jax.random.normal(ks[3], (1, key_query_dim), jnp.float32),
        "wk": sc * jax.random.normal(ks[4], (hidden_dim, key_query_dim), jnp.float32),
        "bk": sc * jax.random.normal(ks[5], (1, key_query_dim), jnp.float32),
        "wv": sc * jax.random.normal(ks[6], (hidden_dim, hidden_dim), jnp.float32),
        "bv": sc * jax.random.normal(ks[7], (1, hidden_dim), jnp.float32),
        "wo": sc * jax.random.normal(ks[8], (hidden_dim, hidden_dim), jnp.float32),
        "bo": sc * jax.random.normal(ks[9], (1, hidden_dim), jnp.float32),
    }


if __name__ == "__main__":
    batch = 4
    num_patches = 16
    hidden_dim = 32
    key_query_dim = 32
    num_heads = 4

    key = jax.random.PRNGKey(0)
    k_x, k_p = jax.random.split(key)
    hidden = jax.random.normal(k_x, (batch, num_patches, hidden_dim), jnp.float32)
    params = make_params(k_p, hidden_dim, key_query_dim)
    fused = prepare_fused_params(params, num_heads)

    out, attn = self_attention_block(hidden, fused, num_heads=num_heads)
    jax.block_until_ready((out, attn))

    ref_out, ref_attn = _reference(hidden, params, num_heads)
    assert out.shape == (batch, num_patches, hidden_dim)
    assert attn.shape == (batch, num_heads, num_patches, num_patches)
    # bf16 MXU operands + approx reciprocal -> slightly looser tolerance than pure f32.
    assert jnp.allclose(out, ref_out, atol=2e-3, rtol=2e-3)
    assert jnp.allclose(attn, ref_attn, atol=2e-3, rtol=2e-3)

    print("KERNEL_OK")
</pallas_src>

<mosaic_0001>
module attributes {stable_mosaic.version = 11 : i64} {
  func.func @_self_attention_kernel(%arg0: i32, %arg1: memref<2x16x32xf32, #tpu.memory_space<vmem>>, %arg2: memref<1x32xf32, #tpu.memory_space<vmem>>, %arg3: memref<1x32xf32, #tpu.memory_space<vmem>>, %arg4: memref<32x96xbf16, #tpu.memory_space<vmem>>, %arg5: memref<1x96xf32, #tpu.memory_space<vmem>>, %arg6: memref<32x32xbf16, #tpu.memory_space<vmem>>, %arg7: memref<1x32xf32, #tpu.memory_space<vmem>>, %arg8: memref<2x16x32xf32, #tpu.memory_space<vmem>>, %arg9: memref<2x4x16x16xf32, #tpu.memory_space<vmem>>) attributes {dimension_semantics = [#tpu.dimension_semantics<parallel>], iteration_bounds = array<i64: 2>, scalar_prefetch = 0 : i64, scratch_operands = 0 : i64, tpu.core_type = #tpu.core_type<tc>, window_params = [{transform_indices = @transform_0, window_bounds = array<i64: 2, 16, 32>}, {pipeline_mode = #tpu.pipeline_mode<synchronous>, transform_indices = @transform_1, window_bounds = array<i64: 1, 32>}, {pipeline_mode = #tpu.pipeline_mode<synchronous>, transform_indices = @transform_2, window_bounds = array<i64: 1, 32>}, {pipeline_mode = #tpu.pipeline_mode<synchronous>, transform_indices = @transform_3, window_bounds = array<i64: 32, 96>}, {pipeline_mode = #tpu.pipeline_mode<synchronous>, transform_indices = @transform_4, window_bounds = array<i64: 1, 96>}, {pipeline_mode = #tpu.pipeline_mode<synchronous>, transform_indices = @transform_5, window_bounds = array<i64: 32, 32>}, {pipeline_mode = #tpu.pipeline_mode<synchronous>, transform_indices = @transform_6, window_bounds = array<i64: 1, 32>}, {transform_indices = @transform_7, window_bounds = array<i64: 2, 16, 32>}, {transform_indices = @transform_8, window_bounds = array<i64: 2, 4, 16, 16>}]} {
    %c0 = arith.constant 0 : index
    %c0_0 = arith.constant 0 : index
    %c0_1 = arith.constant 0 : index
    %0 = vector.load %arg1[%c0, %c0_0, %c0_1] : memref<2x16x32xf32, #tpu.memory_space<vmem>>, vector<2x16x32xf32>
    %cst = arith.constant dense<0.000000e+00> : vector<2x16xf32>
    %1 = vector.multi_reduction <add>, %0, %cst [2] : vector<2x16x32xf32> to vector<2x16xf32>
    %2 = vector.shape_cast %1 : vector<2x16xf32> to vector<2x16x1xf32>
    %cst_2 = arith.constant 3.200000e+01 : f32
    %3 = vector.broadcast %cst_2 : f32 to vector<2x16x1xf32>
    %4 = arith.divf %2, %3 : vector<2x16x1xf32>
    %5 = vector.broadcast %4 : vector<2x16x1xf32> to vector<2x16x32xf32>
    %6 = arith.subf %0, %5 : vector<2x16x32xf32>
    %7 = arith.mulf %6, %6 : vector<2x16x32xf32>
    %cst_3 = arith.constant dense<0.000000e+00> : vector<2x16xf32>
    %8 = vector.multi_reduction <add>, %7, %cst_3 [2] : vector<2x16x32xf32> to vector<2x16xf32>
    %9 = vector.shape_cast %8 : vector<2x16xf32> to vector<2x16x1xf32>
    %cst_4 = arith.constant 3.200000e+01 : f32
    %10 = vector.broadcast %cst_4 : f32 to vector<2x16x1xf32>
    %11 = arith.divf %9, %10 : vector<2x16x1xf32>
    %cst_5 = arith.constant 9.99999974E-6 : f32
    %12 = vector.broadcast %cst_5 : f32 to vector<2x16x1xf32>
    %13 = arith.addf %11, %12 : vector<2x16x1xf32>
    %14 = math.rsqrt %13 : vector<2x16x1xf32>
    %15 = vector.broadcast %14 : vector<2x16x1xf32> to vector<2x16x32xf32>
    %16 = arith.mulf %6, %15 : vector<2x16x32xf32>
    %c0_6 = arith.constant 0 : index
    %c0_7 = arith.constant 0 : index
    %17 = vector.load %arg2[%c0_6, %c0_7] : memref<1x32xf32, #tpu.memory_space<vmem>>, vector<1x32xf32>
    %18 = vector.shape_cast %17 : vector<1x32xf32> to vector<32xf32>
    %19 = vector.shape_cast %18 : vector<32xf32> to vector<1x1x32xf32>
    %20 = vector.broadcast %19 : vector<1x1x32xf32> to vector<2x16x32xf32>
    %21 = arith.mulf %16, %20 : vector<2x16x32xf32>
    %c0_8 = arith.constant 0 : index
    %c0_9 = arith.constant 0 : index
    %22 = vector.load %arg3[%c0_8, %c0_9] : memref<1x32xf32, #tpu.memory_space<vmem>>, vector<1x32xf32>
    %23 = vector.shape_cast %22 : vector<1x32xf32> to vector<32xf32>
    %24 = vector.shape_cast %23 : vector<32xf32> to vector<1x1x32xf32>
    %25 = vector.broadcast %24 : vector<1x1x32xf32> to vector<2x16x32xf32>
    %26 = arith.addf %21, %25 : vector<2x16x32xf32>
    %27 = vector.shape_cast %26 : vector<2x16x32xf32> to vector<32x32xf32>
    %28 = arith.truncf %27 : vector<32x32xf32> to vector<32x32xbf16>
    %c0_10 = arith.constant 0 : index
    %c0_11 = arith.constant 0 : index
    %29 = vector.load %arg4[%c0_10, %c0_11] : memref<32x96xbf16, #tpu.memory_space<vmem>>, vector<32x96xbf16>
    %cst_12 = arith.constant dense<0.000000e+00> : vector<32x96xf32>
    %30 = tpu.matmul %28, %29, %cst_12 {dimension_numbers = #tpu.dot_dimension_numbers<[1], [0], [0], [1], [0, 0, 1, 1], [], []>} : vector<32x32xbf16>, vector<32x96xbf16>, vector<32x96xf32> -> vector<32x96xf32>
    %c0_13 = arith.constant 0 : index
    %c0_14 = arith.constant 0 : index
    %31 = vector.load %arg5[%c0_13, %c0_14] : memref<1x96xf32, #tpu.memory_space<vmem>>, vector<1x96xf32>
    %32 = vector.shape_cast %31 : vector<1x96xf32> to vector<96xf32>
    %33 = vector.shape_cast %32 : vector<96xf32> to vector<1x96xf32>
    %34 = vector.broadcast %33 : vector<1x96xf32> to vector<32x96xf32>
    %35 = arith.addf %30, %34 : vector<32x96xf32>
    %36 = vector.extract_strided_slice %35 {offsets = [0, 0], sizes = [32, 8], strides = [1, 1]} : vector<32x96xf32> to vector<32x8xf32>
    %37 = vector.shape_cast %36 : vector<32x8xf32> to vector<2x16x8xf32>
    %38 = vector.extract_strided_slice %35 {offsets = [0, 8], sizes = [32, 8], strides = [1, 1]} : vector<32x96xf32> to vector<32x8xf32>
    %39 = vector.shape_cast %38 : vector<32x8xf32> to vector<2x16x8xf32>
    %40 = vector.extract_strided_slice %35 {offsets = [0, 16], sizes = [32, 8], strides = [1, 1]} : vector<32x96xf32> to vector<32x8xf32>
    %41 = vector.shape_cast %40 : vector<32x8xf32> to vector<2x16x8xf32>
    %42 = vector.extract_strided_slice %35 {offsets = [0, 24], sizes = [32, 8], strides = [1, 1]} : vector<32x96xf32> to vector<32x8xf32>
    %43 = vector.shape_cast %42 : vector<32x8xf32> to vector<2x16x8xf32>
    %44 = vector.shape_cast %37 : vector<2x16x8xf32> to vector<1x2x16x8xf32>
    %45 = vector.shape_cast %39 : vector<2x16x8xf32> to vector<1x2x16x8xf32>
    %46 = vector.shape_cast %41 : vector<2x16x8xf32> to vector<1x2x16x8xf32>
    %47 = vector.shape_cast %43 : vector<2x16x8xf32> to vector<1x2x16x8xf32>
    %48 = tpu.concatenate %44, %45, %46, %47 in 0 : vector<1x2x16x8xf32>, vector<1x2x16x8xf32>, vector<1x2x16x8xf32>, vector<1x2x16x8xf32> -> vector<4x2x16x8xf32>
    %49 = vector.shape_cast %48 : vector<4x2x16x8xf32> to vector<8x16x8xf32>
    %50 = arith.truncf %49 : vector<8x16x8xf32> to vector<8x16x8xbf16>
    %51 = vector.extract_strided_slice %35 {offsets = [0, 32], sizes = [32, 8], strides = [1, 1]} : vector<32x96xf32> to vector<32x8xf32>
    %52 = vector.shape_cast %51 : vector<32x8xf32> to vector<2x16x8xf32>
    %53 = vector.extract_strided_slice %35 {offsets = [0, 40], sizes = [32, 8], strides = [1, 1]} : vector<32x96xf32> to vector<32x8xf32>
    %54 = vector.shape_cast %53 : vector<32x8xf32> to vector<2x16x8xf32>
    %55 = vector.extract_strided_slice %35 {offsets = [0, 48], sizes = [32, 8], strides = [1, 1]} : vector<32x96xf32> to vector<32x8xf32>
    %56 = vector.shape_cast %55 : vector<32x8xf32> to vector<2x16x8xf32>
    %57 = vector.extract_strided_slice %35 {offsets = [0, 56], sizes = [32, 8], strides = [1, 1]} : vector<32x96xf32> to vector<32x8xf32>
    %58 = vector.shape_cast %57 : vector<32x8xf32> to vector<2x16x8xf32>
    %59 = vector.shape_cast %52 : vector<2x16x8xf32> to vector<1x2x16x8xf32>
    %60 = vector.shape_cast %54 : vector<2x16x8xf32> to vector<1x2x16x8xf32>
    %61 = vector.shape_cast %56 : vector<2x16x8xf32> to vector<1x2x16x8xf32>
    %62 = vector.shape_cast %58 : vector<2x16x8xf32> to vector<1x2x16x8xf32>
    %63 = tpu.concatenate %59, %60, %61, %62 in 0 : vector<1x2x16x8xf32>, vector<1x2x16x8xf32>, vector<1x2x16x8xf32>, vector<1x2x16x8xf32> -> vector<4x2x16x8xf32>
    %64 = vector.shape_cast %63 : vector<4x2x16x8xf32> to vector<8x16x8xf32>
    %65 = arith.truncf %64 : vector<8x16x8xf32> to vector<8x16x8xbf16>
    %66 = vector.extract_strided_slice %35 {offsets = [0, 64], sizes = [32, 8], strides = [1, 1]} : vector<32x96xf32> to vector<32x8xf32>
    %67 = vector.shape_cast %66 : vector<32x8xf32> to vector<2x16x8xf32>
    %68 = vector.extract_strided_slice %35 {offsets = [0, 72], sizes = [32, 8], strides = [1, 1]} : vector<32x96xf32> to vector<32x8xf32>
    %69 = vector.shape_cast %68 : vector<32x8xf32> to vector<2x16x8xf32>
    %70 = vector.extract_strided_slice %35 {offsets = [0, 80], sizes = [32, 8], strides = [1, 1]} : vector<32x96xf32> to vector<32x8xf32>
    %71 = vector.shape_cast %70 : vector<32x8xf32> to vector<2x16x8xf32>
    %72 = vector.extract_strided_slice %35 {offsets = [0, 88], sizes = [32, 8], strides = [1, 1]} : vector<32x96xf32> to vector<32x8xf32>
    %73 = vector.shape_cast %72 : vector<32x8xf32> to vector<2x16x8xf32>
    %74 = vector.shape_cast %67 : vector<2x16x8xf32> to vector<1x2x16x8xf32>
    %75 = vector.shape_cast %69 : vector<2x16x8xf32> to vector<1x2x16x8xf32>
    %76 = vector.shape_cast %71 : vector<2x16x8xf32> to vector<1x2x16x8xf32>
    %77 = vector.shape_cast %73 : vector<2x16x8xf32> to vector<1x2x16x8xf32>
    %78 = tpu.concatenate %74, %75, %76, %77 in 0 : vector<1x2x16x8xf32>, vector<1x2x16x8xf32>, vector<1x2x16x8xf32>, vector<1x2x16x8xf32> -> vector<4x2x16x8xf32>
    %79 = vector.shape_cast %78 : vector<4x2x16x8xf32> to vector<8x16x8xf32>
    %80 = arith.truncf %79 : vector<8x16x8xf32> to vector<8x16x8xbf16>
    "tpu.trace_start"() <{level = 10 : i32, message = "bqd,bkd->bqk"}> : () -> ()
    %cst_15 = arith.constant dense<0.000000e+00> : vector<8x16x16xf32>
    %81 = tpu.matmul %50, %65, %cst_15 {dimension_numbers = #tpu.dot_dimension_numbers<[2], [2], [1], [1], [0, 0, 0, 1, 1, 1], [0], [0]>} : vector<8x16x8xbf16>, vector<8x16x8xbf16>, vector<8x16x16xf32> -> vector<8x16x16xf32>
    "tpu.trace_stop"() : () -> ()
    %cst_16 = arith.constant dense<0xFF800000> : vector<8x16xf32>
    %82 = vector.multi_reduction <maximumf>, %81, %cst_16 [2] : vector<8x16x16xf32> to vector<8x16xf32>
    %83 = vector.shape_cast %82 : vector<8x16xf32> to vector<8x16x1xf32>
    %84 = vector.broadcast %83 : vector<8x16x1xf32> to vector<8x16x16xf32>
    %85 = arith.subf %81, %84 : vector<8x16x16xf32>
    %86 = math.exp %85 : vector<8x16x16xf32>
    %cst_17 = arith.constant dense<0.000000e+00> : vector<8x16xf32>
    %87 = vector.multi_reduction <add>, %86, %cst_17 [2] : vector<8x16x16xf32> to vector<8x16xf32>
    %88 = vector.shape_cast %87 : vector<8x16xf32> to vector<8x16x1xf32>
    %89 = tpu.reciprocal %88 {approx = true} : vector<8x16x1xf32> -> vector<8x16x1xf32>
    %90 = vector.broadcast %89 : vector<8x16x1xf32> to vector<8x16x16xf32>
    %91 = arith.mulf %86, %90 : vector<8x16x16xf32>
    %92 = vector.shape_cast %91 : vector<8x16x16xf32> to vector<4x2x16x16xf32>
    %93 = vector.extract_strided_slice %92 {offsets = [0, 0, 0, 0], sizes = [1, 2, 16, 16], strides = [1, 1, 1, 1]} : vector<4x2x16x16xf32> to vector<1x2x16x16xf32>
    %94 = vector.shape_cast %93 : vector<1x2x16x16xf32> to vector<2x16x16xf32>
    %c0_18 = arith.constant 0 : index
    %c0_19 = arith.constant 0 : index
    %c0_20 = arith.constant 0 : index
    %c0_21 = arith.constant 0 : index
    %95 = vector.load %arg9[%c0_18, %c0_19, %c0_20, %c0_21] : memref<2x4x16x16xf32, #tpu.memory_space<vmem>>, vector<2x1x16x16xf32>
    %96 = vector.shape_cast %95 : vector<2x1x16x16xf32> to vector<2x16x16xf32>
    %97 = vector.shape_cast %94 : vector<2x16x16xf32> to vector<2x1x16x16xf32>
    tpu.vector_store %arg9[%c0_18, %c0_19, %c0_20, %c0_21], %97 {strides = array<i32>} : memref<2x4x16x16xf32, #tpu.memory_space<vmem>>, vector<2x1x16x16xf32>,
    %98 = vector.extract_strided_slice %92 {offsets = [1, 0, 0, 0], sizes = [1, 2, 16, 16], strides = [1, 1, 1, 1]} : vector<4x2x16x16xf32> to vector<1x2x16x16xf32>
    %99 = vector.shape_cast %98 : vector<1x2x16x16xf32> to vector<2x16x16xf32>
    %c0_22 = arith.constant 0 : index
    %c1 = arith.constant 1 : index
    %c0_23 = arith.constant 0 : index
    %c0_24 = arith.constant 0 : index
    %100 = vector.load %arg9[%c0_22, %c1, %c0_23, %c0_24] : memref<2x4x16x16xf32, #tpu.memory_space<vmem>>, vector<2x1x16x16xf32>
    %101 = vector.shape_cast %100 : vector<2x1x16x16xf32> to vector<2x16x16xf32>
    %102 = vector.shape_cast %99 : vector<2x16x16xf32> to vector<2x1x16x16xf32>
    tpu.vector_store %arg9[%c0_22, %c1, %c0_23, %c0_24], %102 {strides = array<i32>} : memref<2x4x16x16xf32, #tpu.memory_space<vmem>>, vector<2x1x16x16xf32>,
    %103 = vector.extract_strided_slice %92 {offsets = [2, 0, 0, 0], sizes = [1, 2, 16, 16], strides = [1, 1, 1, 1]} : vector<4x2x16x16xf32> to vector<1x2x16x16xf32>
    %104 = vector.shape_cast %103 : vector<1x2x16x16xf32> to vector<2x16x16xf32>
    %c0_25 = arith.constant 0 : index
    %c2 = arith.constant 2 : index
    %c0_26 = arith.constant 0 : index
    %c0_27 = arith.constant 0 : index
    %105 = vector.load %arg9[%c0_25, %c2, %c0_26, %c0_27] : memref<2x4x16x16xf32, #tpu.memory_space<vmem>>, vector<2x1x16x16xf32>
    %106 = vector.shape_cast %105 : vector<2x1x16x16xf32> to vector<2x16x16xf32>
    %107 = vector.shape_cast %104 : vector<2x16x16xf32> to vector<2x1x16x16xf32>
    tpu.vector_store %arg9[%c0_25, %c2, %c0_26, %c0_27], %107 {strides = array<i32>} : memref<2x4x16x16xf32, #tpu.memory_space<vmem>>, vector<2x1x16x16xf32>,
    %108 = vector.extract_strided_slice %92 {offsets = [3, 0, 0, 0], sizes = [1, 2, 16, 16], strides = [1, 1, 1, 1]} : vector<4x2x16x16xf32> to vector<1x2x16x16xf32>
    %109 = vector.shape_cast %108 : vector<1x2x16x16xf32> to vector<2x16x16xf32>
    %c0_28 = arith.constant 0 : index
    %c3 = arith.constant 3 : index
    %c0_29 = arith.constant 0 : index
    %c0_30 = arith.constant 0 : index
    %110 = vector.load %arg9[%c0_28, %c3, %c0_29, %c0_30] : memref<2x4x16x16xf32, #tpu.memory_space<vmem>>, vector<2x1x16x16xf32>
    %111 = vector.shape_cast %110 : vector<2x1x16x16xf32> to vector<2x16x16xf32>
    %112 = vector.shape_cast %109 : vector<2x16x16xf32> to vector<2x1x16x16xf32>
    tpu.vector_store %arg9[%c0_28, %c3, %c0_29, %c0_30], %112 {strides = array<i32>} : memref<2x4x16x16xf32, #tpu.memory_space<vmem>>, vector<2x1x16x16xf32>,
    %113 = arith.truncf %91 : vector<8x16x16xf32> to vector<8x16x16xbf16>
    "tpu.trace_start"() <{level = 10 : i32, message = "bqk,bkd->bqd"}> : () -> ()
    %cst_31 = arith.constant dense<0.000000e+00> : vector<8x16x8xf32>
    %114 = tpu.matmul %113, %80, %cst_31 {dimension_numbers = #tpu.dot_dimension_numbers<[2], [1], [1], [2], [0, 0, 0, 1, 1, 2], [0], [0]>} : vector<8x16x16xbf16>, vector<8x16x8xbf16>, vector<8x16x8xf32> -> vector<8x16x8xf32>
    "tpu.trace_stop"() : () -> ()
    %115 = vector.shape_cast %114 : vector<8x16x8xf32> to vector<4x2x16x8xf32>
    %116 = vector.extract_strided_slice %115 {offsets = [0, 0, 0, 0], sizes = [1, 2, 16, 8], strides = [1, 1, 1, 1]} : vector<4x2x16x8xf32> to vector<1x2x16x8xf32>
    %117 = vector.shape_cast %116 : vector<1x2x16x8xf32> to vector<2x16x8xf32>
    %118 = vector.extract_strided_slice %115 {offsets = [1, 0, 0, 0], sizes = [1, 2, 16, 8], strides = [1, 1, 1, 1]} : vector<4x2x16x8xf32> to vector<1x2x16x8xf32>
    %119 = vector.shape_cast %118 : vector<1x2x16x8xf32> to vector<2x16x8xf32>
    %120 = vector.extract_strided_slice %115 {offsets = [2, 0, 0, 0], sizes = [1, 2, 16, 8], strides = [1, 1, 1, 1]} : vector<4x2x16x8xf32> to vector<1x2x16x8xf32>
    %121 = vector.shape_cast %120 : vector<1x2x16x8xf32> to vector<2x16x8xf32>
    %122 = vector.extract_strided_slice %115 {offsets = [3, 0, 0, 0], sizes = [1, 2, 16, 8], strides = [1, 1, 1, 1]} : vector<4x2x16x8xf32> to vector<1x2x16x8xf32>
    %123 = vector.shape_cast %122 : vector<1x2x16x8xf32> to vector<2x16x8xf32>
    %124 = tpu.concatenate %117, %119, %121, %123 in 2 : vector<2x16x8xf32>, vector<2x16x8xf32>, vector<2x16x8xf32>, vector<2x16x8xf32> -> vector<2x16x32xf32>
    %125 = vector.shape_cast %124 : vector<2x16x32xf32> to vector<32x32xf32>
    %126 = arith.truncf %125 : vector<32x32xf32> to vector<32x32xbf16>
    %c0_32 = arith.constant 0 : index
    %c0_33 = arith.constant 0 : index
    %127 = vector.load %arg6[%c0_32, %c0_33] : memref<32x32xbf16, #tpu.memory_space<vmem>>, vector<32x32xbf16>
    %cst_34 = arith.constant dense<0.000000e+00> : vector<32x32xf32>
    %128 = tpu.matmul %126, %127, %cst_34 {dimension_numbers = #tpu.dot_dimension_numbers<[1], [0], [0], [1], [0, 0, 1, 1], [], []>} : vector<32x32xbf16>, vector<32x32xbf16>, vector<32x32xf32> -> vector<32x32xf32>
    %c0_35 = arith.constant 0 : index
    %c0_36 = arith.constant 0 : index
    %129 = vector.load %arg7[%c0_35, %c0_36] : memref<1x32xf32, #tpu.memory_space<vmem>>, vector<1x32xf32>
    %130 = vector.shape_cast %129 : vector<1x32xf32> to vector<32xf32>
    %131 = vector.shape_cast %130 : vector<32xf32> to vector<1x32xf32>
    %132 = vector.broadcast %131 : vector<1x32xf32> to vector<32x32xf32>
    %133 = arith.addf %128, %132 : vector<32x32xf32>
    %134 = vector.shape_cast %133 : vector<32x32xf32> to vector<2x16x32xf32>
    %135 = arith.addf %134, %0 : vector<2x16x32xf32>
    %c0_37 = arith.constant 0 : index
    %c0_38 = arith.constant 0 : index
    %c0_39 = arith.constant 0 : index
    %136 = vector.load %arg8[%c0_37, %c0_38, %c0_39] : memref<2x16x32xf32, #tpu.memory_space<vmem>>, vector<2x16x32xf32>
    tpu.vector_store %arg8[%c0_37, %c0_38, %c0_39], %135 {strides = array<i32>} : memref<2x16x32xf32, #tpu.memory_space<vmem>>, vector<2x16x32xf32>,
    return
  }
  func.func @transform_0(%arg0: i32) -> (i32, i32, i32) {
    %c0_i32 = arith.constant 0 : i32
    %c0_i32_0 = arith.constant 0 : i32
    %c0_i32_1 = arith.constant 0 : i32
    return %arg0, %c0_i32, %c0_i32_0 : i32, i32, i32
  }
  func.func @transform_1(%arg0: i32) -> (i32, i32) {
    %c0_i32 = arith.constant 0 : i32
    %c0_i32_0 = arith.constant 0 : i32
    %c0_i32_1 = arith.constant 0 : i32
    return %c0_i32, %c0_i32_0 : i32, i32
  }
  func.func @transform_2(%arg0: i32) -> (i32, i32) {
    %c0_i32 = arith.constant 0 : i32
    %c0_i32_0 = arith.constant 0 : i32
    %c0_i32_1 = arith.constant 0 : i32
    return %c0_i32, %c0_i32_0 : i32, i32
  }
  func.func @transform_3(%arg0: i32) -> (i32, i32) {
    %c0_i32 = arith.constant 0 : i32
    %c0_i32_0 = arith.constant 0 : i32
    %c0_i32_1 = arith.constant 0 : i32
    return %c0_i32, %c0_i32_0 : i32, i32
  }
  func.func @transform_4(%arg0: i32) -> (i32, i32) {
    %c0_i32 = arith.constant 0 : i32
    %c0_i32_0 = arith.constant 0 : i32
    %c0_i32_1 = arith.constant 0 : i32
    return %c0_i32, %c0_i32_0 : i32, i32
  }
  func.func @transform_5(%arg0: i32) -> (i32, i32) {
    %c0_i32 = arith.constant 0 : i32
    %c0_i32_0 = arith.constant 0 : i32
    %c0_i32_1 = arith.constant 0 : i32
    return %c0_i32, %c0_i32_0 : i32, i32
  }
  func.func @transform_6(%arg0: i32) -> (i32, i32) {
    %c0_i32 = arith.constant 0 : i32
    %c0_i32_0 = arith.constant 0 : i32
    %c0_i32_1 = arith.constant 0 : i32
    return %c0_i32, %c0_i32_0 : i32, i32
  }
  func.func @transform_7(%arg0: i32) -> (i32, i32, i32) {
    %c0_i32 = arith.constant 0 : i32
    %c0_i32_0 = arith.constant 0 : i32
    %c0_i32_1 = arith.constant 0 : i32
    return %arg0, %c0_i32, %c0_i32_0 : i32, i32, i32
  }
  func.func @transform_8(%arg0: i32) -> (i32, i32, i32, i32) {
    %c0_i32 = arith.constant 0 : i32
    %c0_i32_0 = arith.constant 0 : i32
    %c0_i32_1 = arith.constant 0 : i32
    %c0_i32_2 = arith.constant 0 : i32
    return %arg0, %c0_i32, %c0_i32_0, %c0_i32_1 : i32, i32, i32, i32
  }
}

</mosaic_0001>

<llo_original>
// kernel: tpu_custom_call.1
$region0: #{tpu_custom_call.1}
  #allocation0 [shape = 'u32[]', space=smem, size = 0x4, offset = 0x4, fixed_abs, tag = 'smem constant byte address 0x4 - core index']
  #allocation1 [shape = 'u32[144,128]{1,0:T(1,128)}', space=vmem, size = 0x12000, scoped, tag = 'internal scratch']
  %s0 = inlined_call_operand.hbm [shape: f32[4,16,32], index: 0, kind: input, shape index: {}]
  %s1 = inlined_call_operand.vmem [shape: f32[1,32], index: 1, kind: input, shape index: {}]
  %s2 = inlined_call_operand.vmem [shape: f32[1,32], index: 2, kind: input, shape index: {}]
  %s3 = inlined_call_operand.hbm [shape: bf16[32,96], index: 3, kind: input, shape index: {}]
  %s4 = inlined_call_operand.hbm [shape: f32[1,96], index: 4, kind: input, shape index: {}]
  %s5 = inlined_call_operand.vmem [shape: bf16[32,32], index: 5, kind: input, shape index: {}]
  %s6 = inlined_call_operand.vmem [shape: f32[1,32], index: 6, kind: input, shape index: {}]
  %s7 = inlined_call_operand.hbm [shape: f32[4,16,32], index: 7, kind: output, shape index: {0}]
  %s8 = inlined_call_operand.hbm [shape: f32[4,4,16,16], index: 8, kind: output, shape index: {1}]
  %9 = xla_tuple %s7, %s8
  %s10 = sld [smem:[#allocation0]]
  $region81: #{tpu_custom_call.1} parent=0
    _
  %s12 = ssub.s32 1, %s10
  %s13 = scalar_select 0, %s12, %s10
  $region1: #{tpu_custom_call.1} parent=0
    #allocation2 [shape = 'u8[32768]{0}', space=vmem, size = 0x8000, scoped, tag = 'input window, operand 0']
    #allocation3 [shape = 's32[2]{0}', space=sflag, size = 0x8, scoped, tag = 'scoped memory for tpu_custom_call.1']
    #allocation4 [shape = 's32[2]{0}', space=sflag, size = 0x8, scoped, tag = 'scoped memory for tpu_custom_call.1']
    #allocation5 [shape = 'u8[8192]{0}', space=vmem, size = 0x2000, scoped, tag = 'input window, operand 3, single buffered']
    #allocation6 [shape = 's32[1]{0}', space=sflag, size = 0x4, scoped, tag = 'scoped memory for tpu_custom_call.1']
    #allocation7 [shape = 'u8[512]{0}', space=vmem, size = 0x400, scoped, tag = 'input window, operand 4, single buffered']
    #allocation8 [shape = 'u8[32768]{0}', space=vmem, size = 0x8000, scoped, tag = 'output window, operand 0']
    #allocation9 [shape = 'u8[131072]{0}', space=vmem, size = 0x20000, scoped, tag = 'output window, operand 1']
    #allocation10 [shape = 's32[2]{0}', space=sflag, size = 0x8, scoped, tag = 'scoped memory for tpu_custom_call.1']
    %14 = vsyncpa [#allocation3], 0
    %s15 = scalar_lea.sflag [#allocation3], 1
    %16 = vsyncpa %s15, 0
    %17 = vsyncpa [#allocation6], 0
    %18 = vsyncpa [#allocation4], 0
    %s19 = scalar_lea.sflag [#allocation4], 1
    %20 = vsyncpa %s19, 0
    %21 = vsyncpa [#allocation10], 0
    %s22 = scalar_lea.sflag [#allocation10], 1
    %23 = vsyncpa %s22, 0
    loop: start=0, step=1, limit=4
    $region2: #{tpu_custom_call.1} parent=1 // loop_pre_header
      _
    $region3: #{tpu_custom_call.1} parent=1 // loop_header
      %s25 = sphi 0, %s29
      %p26 = scmp.ge.s32.totalorder %s25, 4
      %s35 = sphi 0, %s37
      %s38 = sphi 0, %s35
      %s39 = sphi 0, %s38
      %s55 = sphi 0, %s39
      %s59 = sphi 0, %s59
      %s61 = sphi 0, %s59
      %s62 = sphi 0, %s61
      %s76 = sphi 0, %s62
      %s80 = sphi 0, %s80
      %s82 = sphi 0, %s80
      %s83 = sphi 0, %s82
      %s97 = sphi 0, %s83
      %s101 = sphi 0, %s101
      %s103 = sphi 0, %s101
      %s104 = sphi 0, %s103
      %s118 = sphi 0, %s104
      %s122 = sphi 0, %s122
      %s124 = sphi 0, %s122
      %s125 = sphi 0, %s124
      %s139 = sphi 0, %s125
      %s143 = sphi 0, %s143
      %s145 = sphi 0, %s143
      %s146 = sphi 0, %s145
      %s160 = sphi 0, %s146
      %s164 = sphi 0, %s164
      %s166 = sphi 0, %s164
      %s167 = sphi 0, %s166
      %s181 = sphi 0, %s167
      %s187 = sphi 0, %s189
      %s190 = sphi 0, %s187
      %s191 = sphi 0, %s190
      %s207 = sphi 0, %s191
      %s213 = sphi 0, %s215
      %s216 = sphi 0, %s213
      %s217 = sphi 0, %s216
      %s233 = sphi 0, %s217
    $region4: #{tpu_custom_call.1} parent=1 // loop_header_branch
      %28 = sbr.rel (%p26) target = $region8
    $region5: #{tpu_custom_call.1} parent=1 // loop_body
      %s30 = ssub.s32 %s25, 1
      %s31 = ssub.s32 %s25, 2
      %s32 = sadd.s32 %s25, 1
      %s33 = ssub.s32 %s25, %s32
      %p34 = scmp.eq.s32.totalorder %s33, 0
      %s36 = sadd.s32 %s35, 1
      %s37 = scalar_select %p34, %s35, %s36
      %p40 = pneg %p34
      %p41 = scmp.eq.s32.totalorder %s25, 1
      %p42 = por %p40, %p41
      %p43 = scmp.ne.s32.totalorder %s35, %s38
      %p44 = scmp.eq.s32.totalorder %s25, 0
      %p45 = por %p43, %p44
      %p46 = scmp.ne.s32.totalorder %s35, %s38
      %p47 = scmp.eq.s32.totalorder %s30, 1
      %p48 = por %p46, %p47
      %p49 = scmp.ne.s32.totalorder %s38, %s39
      %p50 = scmp.eq.s32.totalorder %s30, 0
      %p51 = por %p49, %p50
      %p52 = scmp.ne.s32.totalorder %s38, %s39
      %p53 = scmp.eq.s32.totalorder %s31, 1
      %p54 = por %p52, %p53
      %p56 = scmp.ne.s32.totalorder %s39, %s55
      %p57 = scmp.eq.s32.totalorder %s31, 0
      %p58 = por %p56, %p57
      %s60 = sadd.s32 %s59, 1
      %p63 = scmp.eq.s32.totalorder %s25, 1
      %p64 = scmp.ne.s32.totalorder %s59, %s61
      %p65 = scmp.eq.s32.totalorder %s25, 0
      %p66 = por %p64, %p65
      %p67 = scmp.ne.s32.totalorder %s59, %s61
      %p68 = scmp.eq.s32.totalorder %s30, 1
      %p69 = por %p67, %p68
      %p70 = scmp.ne.s32.totalorder %s61, %s62
      %p71 = scmp.eq.s32.totalorder %s30, 0
      %p72 = por %p70, %p71
      %p73 = scmp.ne.s32.totalorder %s61, %s62
      %p74 = scmp.eq.s32.totalorder %s31, 1
      %p75 = por %p73, %p74
      %p77 = scmp.ne.s32.totalorder %s62, %s76
      %p78 = scmp.eq.s32.totalorder %s31, 0
      %p79 = por %p77, %p78
      %s81 = sadd.s32 %s80, 1
      %p84 = scmp.eq.s32.totalorder %s25, 1
      %p85 = scmp.ne.s32.totalorder %s80, %s82
      %p86 = scmp.eq.s32.totalorder %s25, 0
      %p87 = por %p85, %p86
      %p88 = scmp.ne.s32.totalorder %s80, %s82
      %p89 = scmp.eq.s32.totalorder %s30, 1
      %p90 = por %p88, %p89
      %p91 = scmp.ne.s32.totalorder %s82, %s83
      %p92 = scmp.eq.s32.totalorder %s30, 0
      %p93 = por %p91, %p92
      %p94 = scmp.ne.s32.totalorder %s82, %s83
      %p95 = scmp.eq.s32.totalorder %s31, 1
      %p96 = por %p94, %p95
      %p98 = scmp.ne.s32.totalorder %s83, %s97
      %p99 = scmp.eq.s32.totalorder %s31, 0
      %p100 = por %p98, %p99
      %s102 = sadd.s32 %s101, 1
      %p105 = scmp.eq.s32.totalorder %s25, 1
      %p106 = scmp.ne.s32.totalorder %s101, %s103
      %p107 = scmp.eq.s32.totalorder %s25, 0
      %p108 = por %p106, %p107
      %p109 = scmp.ne.s32.totalorder %s101, %s103
      %p110 = scmp.eq.s32.totalorder %s30, 1
      %p111 = por %p109, %p110
      %p112 = scmp.ne.s32.totalorder %s103, %s104
      %p113 = scmp.eq.s32.totalorder %s30, 0
      %p114 = por %p112, %p113
      %p115 = scmp.ne.s32.totalorder %s103, %s104
      %p116 = scmp.eq.s32.totalorder %s31, 1
      %p117 = por %p115, %p116
      %p119 = scmp.ne.s32.totalorder %s104, %s118
      %p120 = scmp.eq.s32.totalorder %s31, 0
      %p121 = por %p119, %p120
      %s123 = sadd.s32 %s122, 1
      %p126 = scmp.eq.s32.totalorder %s25, 1
      %p127 = scmp.ne.s32.totalorder %s122, %s124
      %p128 = scmp.eq.s32.totalorder %s25, 0
      %p129 = por %p127, %p128
      %p130 = scmp.ne.s32.totalorder %s122, %s124
      %p131 = scmp.eq.s32.totalorder %s30, 1
      %p132 = por %p130, %p131
      %p133 = scmp.ne.s32.totalorder %s124, %s125
      %p134 = scmp.eq.s32.totalorder %s30, 0
      %p135 = por %p133, %p134
      %p136 = scmp.ne.s32.totalorder %s124, %s125
      %p137 = scmp.eq.s32.totalorder %s31, 1
      %p138 = por %p136, %p137
      %p140 = scmp.ne.s32.totalorder %s125, %s139
      %p141 = scmp.eq.s32.totalorder %s31, 0
      %p142 = por %p140, %p141
      %s144 = sadd.s32 %s143, 1
      %p147 = scmp.eq.s32.totalorder %s25, 1
      %p148 = scmp.ne.s32.totalorder %s143, %s145
      %p149 = scmp.eq.s32.totalorder %s25, 0
      %p150 = por %p148, %p149
      %p151 = scmp.ne.s32.totalorder %s143, %s145
      %p152 = scmp.eq.s32.totalorder %s30, 1
      %p153 = por %p151, %p152
      %p154 = scmp.ne.s32.totalorder %s145, %s146
      %p155 = scmp.eq.s32.totalorder %s30, 0
      %p156 = por %p154, %p155
      %p157 = scmp.ne.s32.totalorder %s145, %s146
      %p158 = scmp.eq.s32.totalorder %s31, 1
      %p159 = por %p157, %p158
      %p161 = scmp.ne.s32.totalorder %s146, %s160
      %p162 = scmp.eq.s32.totalorder %s31, 0
      %p163 = por %p161, %p162
      %s165 = sadd.s32 %s164, 1
      %p168 = scmp.eq.s32.totalorder %s25, 1
      %p169 = scmp.ne.s32.totalorder %s164, %s166
      %p170 = scmp.eq.s32.totalorder %s25, 0
      %p171 = por %p169, %p170
      %p172 = scmp.ne.s32.totalorder %s164, %s166
      %p173 = scmp.eq.s32.totalorder %s30, 1
      %p174 = por %p172, %p173
      %p175 = scmp.ne.s32.totalorder %s166, %s167
      %p176 = scmp.eq.s32.totalorder %s30, 0
      %p177 = por %p175, %p176
      %p178 = scmp.ne.s32.totalorder %s166, %s167
      %p179 = scmp.eq.s32.totalorder %s31, 1
      %p180 = por %p178, %p179
      %p182 = scmp.ne.s32.totalorder %s167, %s181
      %p183 = scmp.eq.s32.totalorder %s31, 0
      %p184 = por %p182, %p183
      %s185 = ssub.s32 %s25, %s32
      %p186 = scmp.eq.s32.totalorder %s185, 0
      %s188 = sadd.s32 %s187, 1
      %s189 = scalar_select %p186, %s187, %s188
      %p192 = pneg %p186
      %p193 = scmp.eq.s32.totalorder %s25, 1
      %p194 = por %p192, %p193
      %p195 = scmp.ne.s32.totalorder %s187, %s190
      %p196 = scmp.eq.s32.totalorder %s25, 0
      %p197 = por %p195, %p196
      %p198 = scmp.ne.s32.totalorder %s187, %s190
      %p199 = scmp.eq.s32.totalorder %s30, 1
      %p200 = por %p198, %p199
      %p201 = scmp.ne.s32.totalorder %s190, %s191
      %p202 = scmp.eq.s32.totalorder %s30, 0
      %p203 = por %p201, %p202
      %p204 = scmp.ne.s32.totalorder %s190, %s191
      %p205 = scmp.eq.s32.totalorder %s31, 1
      %p206 = por %p204, %p205
      %p208 = scmp.ne.s32.totalorder %s191, %s207
      %p209 = scmp.eq.s32.totalorder %s31, 0
      %p210 = por %p208, %p209
      %s211 = ssub.s32 %s25, %s32
      %p212 = scmp.eq.s32.totalorder %s211, 0
      %s214 = sadd.s32 %s213, 1
      %s215 = scalar_select %p212, %s213, %s214
      %p218 = pneg %p212
      %p219 = scmp.eq.s32.totalorder %s25, 1
      %p220 = por %p218, %p219
      %p221 = scmp.ne.s32.totalorder %s213, %s216
      %p222 = scmp.eq.s32.totalorder %s25, 0
      %p223 = por %p221, %p222
      %p224 = scmp.ne.s32.totalorder %s213, %s216
      %p225 = scmp.eq.s32.totalorder %s30, 1
      %p226 = por %p224, %p225
      %p227 = scmp.ne.s32.totalorder %s216, %s217
      %p228 = scmp.eq.s32.totalorder %s30, 0
      %p229 = por %p227, %p228
      %p230 = scmp.ne.s32.totalorder %s216, %s217
      %p231 = scmp.eq.s32.totalorder %s31, 1
      %p232 = por %p230, %p231
      %p234 = scmp.ne.s32.totalorder %s217, %s233
      %p235 = scmp.eq.s32.totalorder %s31, 0
      %p236 = por %p234, %p235
      %p237 = scmp.le.s32.totalorder 1, %s25
      %p238 = scmp.lt.s32.totalorder %s25, 3
      %p239 = pnand %p237, %p238
      %p240 = pneg %p239
      // Predicated region
      $region9: #{tpu_custom_call.1} parent=5 // pred_check
        _
      $region10: #{tpu_custom_call.1} parent=5 // pred_check_branch
        %242 = sbr.rel (%p239) target = $region12
      $region11: #{tpu_custom_call.1} parent=5 // pred_region
        %s243 = ssub.s32 %s25, 1
        // Predicated region
        $region13: #{tpu_custom_call.1} parent=11 // pred_check
          %p244 = pneg %p72
        $region14: #{tpu_custom_call.1} parent=11 // pred_check_branch
          %246 = sbr.rel (%p244) target = $region16
        $region15: #{tpu_custom_call.1} parent=11 // pred_region
          _
        $region16: #{tpu_custom_call.1} parent=11 // pred_fallthru
          _
        // Predicated region
        $region17: #{tpu_custom_call.1} parent=11 // pred_check
          %p247 = pneg %p93
        $region18: #{tpu_custom_call.1} parent=11 // pred_check_branch
          %249 = sbr.rel (%p247) target = $region20
        $region19: #{tpu_custom_call.1} parent=11 // pred_region
          _
        $region20: #{tpu_custom_call.1} parent=11 // pred_fallthru
          _
        // Predicated region
        $region21: #{tpu_custom_call.1} parent=11 // pred_check
          %p250 = pneg %p114
        $region22: #{tpu_custom_call.1} parent=11 // pred_check_branch
          %252 = sbr.rel (%p250) target = $region24
        $region23: #{tpu_custom_call.1} parent=11 // pred_region
          %s254 = ssub.s32 256, 256
          %255 = vsyncadd [#allocation6], %s254
          %s256 = sshll.u32 [#allocation5], 4
          %s257 = int_to_ptr.vmem [resolvable:$true] %s256
          %262 = dma.hbm_to_vmem [thread:$0]  %s3, 256, %s257, [#allocation6], 64, 64, 4
        $region24: #{tpu_custom_call.1} parent=11 // pred_fallthru
          _
        // Predicated region
        $region25: #{tpu_custom_call.1} parent=11 // pred_check
          %p263 = pneg %p135
        $region26: #{tpu_custom_call.1} parent=11 // pred_check_branch
          %265 = sbr.rel (%p263) target = $region28
        $region27: #{tpu_custom_call.1} parent=11 // pred_region
          %s267 = ssub.s32 16, 16
          %268 = vsyncadd [#allocation6], %s267
          %s270 = sshll.u32 [#allocation7], 4
          %s271 = int_to_ptr.vmem [resolvable:$true] %s270
          %273 = dma.hbm_to_vmem [thread:$0]  %s4, 16, %s271, [#allocation6]
        $region28: #{tpu_custom_call.1} parent=11 // pred_fallthru
          _
        // Predicated region
        $region29: #{tpu_custom_call.1} parent=11 // pred_check
          %p274 = pneg %p156
        $region30: #{tpu_custom_call.1} parent=11 // pred_check_branch
          %276 = sbr.rel (%p274) target = $region32
        $region31: #{tpu_custom_call.1} parent=11 // pred_region
          _
        $region32: #{tpu_custom_call.1} parent=11 // pred_fallthru
          _
        // Predicated region
        $region33: #{tpu_custom_call.1} parent=11 // pred_check
          %p277 = pneg %p177
        $region34: #{tpu_custom_call.1} parent=11 // pred_check_branch
          %279 = sbr.rel (%p277) target = $region36
        $region35: #{tpu_custom_call.1} parent=11 // pred_region
          _
        $region36: #{tpu_custom_call.1} parent=11 // pred_fallthru
          _
      $region12: #{tpu_custom_call.1} parent=5 // pred_fallthru
        _
      %p280 = scmp.lt.s32.totalorder %s25, 2
      // Predicated region
      $region37: #{tpu_custom_call.1} parent=5 // pred_check
        %p281 = pneg %p280
      $region38: #{tpu_custom_call.1} parent=5 // pred_check_branch
        %283 = sbr.rel (%p281) target = $region40
      $region39: #{tpu_custom_call.1} parent=5 // pred_region
        // Predicated region
        $region41: #{tpu_custom_call.1} parent=39 // pred_check
          %p284 = pneg %p45
        $region42: #{tpu_custom_call.1} parent=39 // pred_check_branch
          %286 = sbr.rel (%p284) target = $region44
        $region43: #{tpu_custom_call.1} parent=39 // pred_region
          %s287 = sand.u32 %s35, 1
          %s288 = scalar_lea.sflag [#allocation3], %s287
          %s289 = sand.u32 %s35, 1
          %s290 = smul.addr %s289, 32
          %s291 = scalar_lea.vmem [#allocation2], %s290
          %s292 = smul.u32 2, %s25
          %s294 = ssub.s32 512, 512
          %295 = vsyncadd %s288, %s294
          %s296 = smul.addr %s292, 2
          %s297 = smul.addr %s296, 128
          %s298 = scalar_lea.hbm %s0, %s297
          %s299 = sshll.u32 %s291, 4
          %s300 = int_to_ptr.vmem [resolvable:$true] %s299
          %305 = dma.hbm_to_vmem [thread:$0]  %s298, 512, %s300, %s288, 128, 128, 8
        $region44: #{tpu_custom_call.1} parent=39 // pred_fallthru
          _
      $region40: #{tpu_custom_call.1} parent=5 // pred_fallthru
        _
      %p306 = scmp.le.s32.totalorder 1, %s25
      %p307 = scmp.lt.s32.totalorder %s25, 3
      %p308 = pnand %p306, %p307
      %p309 = pneg %p308
      // Predicated region
      $region45: #{tpu_custom_call.1} parent=5 // pred_check
        _
      $region46: #{tpu_custom_call.1} parent=5 // pred_check_branch
        %311 = sbr.rel (%p308) target = $region48
      $region47: #{tpu_custom_call.1} parent=5 // pred_region
        %s312 = ssub.s32 %s25, 1
        %s313 = sand.u32 %s38, 1
        %s314 = scalar_lea.sflag [#allocation3], %s313
        %s315 = sand.u32 %s38, 1
        %s316 = smul.addr %s315, 32
        %s317 = scalar_lea.vmem [#allocation2], %s316
        // Predicated region
        $region49: #{tpu_custom_call.1} parent=47 // pred_check
          %p318 = pneg %p51
        $region50: #{tpu_custom_call.1} parent=47 // pred_check_branch
          %320 = sbr.rel (%p318) target = $region52
        $region51: #{tpu_custom_call.1} parent=47 // pred_region
          %321 = dma.done %s314, 512
        $region52: #{tpu_custom_call.1} parent=47 // pred_fallthru
          _
        // Predicated region
        $region53: #{tpu_custom_call.1} parent=47 // pred_check
          %p322 = pneg %p114
        $region54: #{tpu_custom_call.1} parent=47 // pred_check_branch
          %324 = sbr.rel (%p322) target = $region56
        $region55: #{tpu_custom_call.1} parent=47 // pred_region
          %325 = dma.done [#allocation6], 256
        $region56: #{tpu_custom_call.1} parent=47 // pred_fallthru
          _
        // Predicated region
        $region57: #{tpu_custom_call.1} parent=47 // pred_check
          %p326 = pneg %p135
        $region58: #{tpu_custom_call.1} parent=47 // pred_check_branch
          %328 = sbr.rel (%p326) target = $region60
        $region59: #{tpu_custom_call.1} parent=47 // pred_region
          %329 = dma.done [#allocation6], 16
        $region60: #{tpu_custom_call.1} parent=47 // pred_fallthru
          _
        %s330 = sand.u32 %s38, 1
        %s331 = scalar_lea.sflag [#allocation3], %s330
        %s332 = sand.u32 %s38, 1
        %s333 = smul.addr %s332, 32
        %s334 = scalar_lea.vmem [#allocation2], %s333
        %p335 = pneg %p51
        %p336 = pneg %p48
        %p337 = pneg %p72
        %p338 = pneg %p69
        %p339 = pneg %p93
        %p340 = pneg %p90
        %p341 = pneg %p114
        %p342 = pneg %p111
        %p343 = pneg %p135
        %p344 = pneg %p132
        %p345 = pneg %p156
        %p346 = pneg %p153
        %p347 = pneg %p177
        %p348 = pneg %p174
        %p349 = pneg %p203
        %p350 = pneg %p200
        %s351 = sand.u32 %s190, 1
        %s352 = scalar_lea.sflag [#allocation4], %s351
        %s353 = sand.u32 %s190, 1
        %s354 = smul.addr %s353, 32
        %s355 = scalar_lea.vmem [#allocation8], %s354
        %p356 = pneg %p229
        %p357 = pneg %p226
        %s358 = sand.u32 %s216, 1
        %s359 = scalar_lea.sflag [#allocation10], %s358
        %s360 = sand.u32 %s216, 1
        %s361 = smul.addr %s360, 128
        %s362 = scalar_lea.vmem [#allocation9], %s361
        %s363 = smul.u32 2, %s30
        %s364 = smul.u32 2, %s30
        %s365 = smul.u32 2, %s30
        %v367 = vld [vmem:[%s317] sm:$0xff]
        %v368 = vld [vmem:[%s317 + $0x8] sm:$0xff]
        %v369 = vld [vmem:[%s317 + $0x10] sm:$0xff]
        %v370 = vld [vmem:[%s317 + $0x18] sm:$0xff]
        %vm371 = vcmask 261120
        %v372 = vsel %vm371, %v367, 0.0
        %373 = vadd.xlane.f32.xlu0 %v372
        %v374 = vpop.xlane.xlu0 %373
        %v375 = vsel %vm371, %v368, 0.0
        %376 = vadd.xlane.f32.xlu0 %v375
        %v377 = vpop.xlane.xlu0 %376
        %v378 = vsel %vm371, %v369, 0.0
        %379 = vadd.xlane.f32.xlu0 %v378
        %v380 = vpop.xlane.xlu0 %379
        %v381 = vsel %vm371, %v370, 0.0
        %382 = vadd.xlane.f32.xlu0 %v381
        %v383 = vpop.xlane.xlu0 %382
        %v384 = vrcp.pop 32.0
        %v385 = vmul.f32 %v374, %v384
        %v386 = vmul.f32 %v377, %v384
        %v387 = vmul.f32 %v380, %v384
        %v388 = vmul.f32 %v383, %v384
        %v389 = vsub.f32 %v367, %v385
        %v390 = vsub.f32 %v368, %v386
        %v391 = vsub.f32 %v369, %v387
        %v392 = vsub.f32 %v370, %v388
        %v393 = vmul.f32 %v389, %v389
        %v394 = vmul.f32 %v390, %v390
        %v395 = vmul.f32 %v391, %v391
        %v396 = vmul.f32 %v392, %v392
        %v397 = vsel %vm371, %v393, 0.0
        %398 = vadd.xlane.f32.xlu0 %v397
        %v399 = vpop.xlane.xlu0 %398
        %v400 = vsel %vm371, %v394, 0.0
        %401 = vadd.xlane.f32.xlu0 %v400
        %v402 = vpop.xlane.xlu0 %401
        %v403 = vsel %vm371, %v395, 0.0
        %404 = vadd.xlane.f32.xlu0 %v403
        %v405 = vpop.xlane.xlu0 %404
        %v406 = vsel %vm371, %v396, 0.0
        %407 = vadd.xlane.f32.xlu0 %v406
        %v408 = vpop.xlane.xlu0 %407
        %v409 = vmul.f32 %v399, %v384
        %v410 = vmul.f32 %v402, %v384
        %v411 = vmul.f32 %v405, %v384
        %v412 = vmul.f32 %v408, %v384
        %v413 = vadd.f32 %v409, 1e-05
        %v414 = vadd.f32 %v410, 1e-05
        %v415 = vadd.f32 %v411, 1e-05
        %v416 = vadd.f32 %v412, 1e-05
        %v417 = vrsqrt.pop %v413
        %v418 = vrsqrt.pop %v414
        %v419 = vrsqrt.pop %v415
        %v420 = vrsqrt.pop %v416
        %v421 = vmul.f32 %v389, %v417
        %v422 = vmul.f32 %v390, %v418
        %v423 = vmul.f32 %v391, %v419
        %v424 = vmul.f32 %v392, %v420
        %v425 = vld [vmem:[%s1] sm:$0x1]
        %v427 = vlaneseq
        %v428 = vshrl.u32 %v427, 7
        %v429 = vsub.s32 0, %v428
        %v430 = vrot.slane %v425, %v429
        %v432 = vmul.f32 %v421, %v430
        %v433 = vmul.f32 %v422, %v430
        %v434 = vmul.f32 %v423, %v430
        %v435 = vmul.f32 %v424, %v430
        %v436 = vld [vmem:[%s2] sm:$0x1]
        %v438 = vlaneseq
        %v439 = vshrl.u32 %v438, 7
        %v440 = vsub.s32 0, %v439
        %v441 = vrot.slane %v436, %v440
        %v443 = vadd.f32 %v432, %v441
        %v444 = vadd.f32 %v433, %v441
        %v445 = vadd.f32 %v434, %v441
        %v446 = vadd.f32 %v435, %v441
        %v447 = vpack.c.bf16 %v444, %v443
        %v448 = vpack.c.bf16 %v446, %v445
        %v449 = vld [vmem:[#allocation5] sm:$0xf]
        %v450 = vld [vmem:[#allocation5 + $0x4] sm:$0xf]
        %v451 = vld [vmem:[#allocation5 + $0x8] sm:$0xf]
        %v452 = vld [vmem:[#allocation5 + $0xc] sm:$0xf]
        %v453 = vld [vmem:[#allocation7] sm:$0x1]
        %v455 = vlaneseq
        %v456 = vshrl.u32 %v455, 7
        %v457 = vsub.s32 0, %v456
        %v458 = vrot.slane %v453, %v457
        %v464 = vunpack.c.l.b16 %v449
        %v465 = vunpack.c.l.b16 %v450
        %v466 = vunpack.c.l.b16 %v451
        %v467 = vunpack.c.l.b16 %v452
        %v468 = vpack.c.b16 %v465, %v464
        %v469 = vpack.c.b16 %v467, %v466
        %v473 = vsel %vm371, %v447, 0
        %v476 = vsel %vm371, %v448, 0
        %478 = vmatprep.subr.bf16.mxu0 0
        %479 = vmatpush1.bf16.msra.mxu0 %v468
        %480 = vmatprep.subr.bf16.mxu0 0
        %481 = vmatpush1.bf16.msra.mxu0 %v469
        %482 = vmatprep.subr.bf16.mxu0 0
        %483 = vmatpush1.bf16.msra.mxu0 0
        %484 = vmatprep.subr.bf16.mxu0 0
        %485 = vmatpush1.bf16.msra.mxu0 0
        %486 = vmatprep.subr.bf16.mxu0 0
        %487 = vmatpush1.bf16.msra.mxu0 0
        %488 = vmatprep.subr.bf16.mxu0 0
        %489 = vmatpush1.bf16.msra.mxu0 0
        %490 = vmatprep.subr.bf16.mxu0 0
        %491 = vmatpush1.bf16.msra.mxu0 0
        %492 = vmatprep.subr.bf16.mxu0 0
        %493 = vmatpush1.bf16.msra.mxu0 0
        %494 = vmatprep.subr.bf16.mxu0 0
        %495 = vmatpush1.bf16.msra.mxu0 0
        %496 = vmatprep.subr.bf16.mxu0 0
        %497 = vmatpush1.bf16.msra.mxu0 0
        %498 = vmatprep.subr.bf16.mxu0 0
        %499 = vmatpush1.bf16.msra.mxu0 0
        %500 = vmatprep.subr.bf16.mxu0 0
        %501 = vmatpush1.bf16.msra.mxu0 0
        %502 = vmatprep.subr.bf16.mxu0 0
        %503 = vmatpush1.bf16.msra.mxu0 0
        %504 = vmatprep.subr.bf16.mxu0 0
        %505 = vmatpush1.bf16.msra.mxu0 0
        %506 = vmatprep.subr.bf16.mxu0 0
        %507 = vmatpush1.bf16.msra.mxu0 0
        %508 = vmatprep.subr.bf16.mxu0 0
        %509 = vmatpush1.bf16.msra.mxu0 0
        %510 = vmatprep.mubr.bf16.mxu0 0
        %511 = vmatmul.mubr.bf16.gmra.mrb[0].mxu0 %v473
        %v512 = vpop.f32.mrb[0].mxu0
        %v513 = vadd.f32 %v458, %v512
        %v514 = vpop.f32.mrb[0].mxu0
        %v515 = vpop.f32.mrb[0].mxu0
        %v516 = vadd.f32 %v458, %v515
        %v517 = vpop.f32.mrb[0].mxu0
        %518 = vmatprep.mubr.bf16.mxu0 0
        %519 = vmatmul.mubr.bf16.gmra.mrb[0].mxu0 %v476
        %v520 = vpop.f32.mrb[0].mxu0
        %v521 = vadd.f32 %v458, %v520
        %v522 = vpop.f32.mrb[0].mxu0
        %v523 = vpop.f32.mrb[0].mxu0
        %v524 = vadd.f32 %v458, %v523
        %v525 = vpop.f32.mrb[0].mxu0
        %526 = vdwg.mxu0
        %531 = vrot.lane.b32.xlu0 %v513, 120
        %v532 = vpop.permute.xlu0 %531
        %533 = vrot.lane.b32.xlu0 %v516, 120
        %v534 = vpop.permute.xlu0 %533
        %535 = vrot.lane.b32.xlu0 %v521, 120
        %v536 = vpop.permute.xlu0 %535
        %537 = vrot.lane.b32.xlu0 %v524, 120
        %v538 = vpop.permute.xlu0 %537
        %543 = vrot.lane.b32.xlu0 %v513, 112
        %v544 = vpop.permute.xlu0 %543
        %545 = vrot.lane.b32.xlu0 %v516, 112
        %v546 = vpop.permute.xlu0 %545
        %547 = vrot.lane.b32.xlu0 %v521, 112
        %v548 = vpop.permute.xlu0 %547
        %549 = vrot.lane.b32.xlu0 %v524, 112
        %v550 = vpop.permute.xlu0 %549
        %555 = vrot.lane.b32.xlu0 %v513, 104
        %v556 = vpop.permute.xlu0 %555
        %557 = vrot.lane.b32.xlu0 %v516, 104
        %v558 = vpop.permute.xlu0 %557
        %559 = vrot.lane.b32.xlu0 %v521, 104
        %v560 = vpop.permute.xlu0 %559
        %561 = vrot.lane.b32.xlu0 %v524, 104
        %v562 = vpop.permute.xlu0 %561
        %v567 = vpack.c.bf16 %v516, %v513
        %v568 = vpack.c.bf16 %v524, %v521
        %v569 = vpack.c.bf16 %v534, %v532
        %v570 = vpack.c.bf16 %v538, %v536
        %v571 = vpack.c.bf16 %v546, %v544
        %v572 = vpack.c.bf16 %v550, %v548
        %v573 = vpack.c.bf16 %v558, %v556
        %v574 = vpack.c.bf16 %v562, %v560
        %576 = vrot.lane.b32.xlu0 %v567, 96
        %v577 = vpop.permute.xlu0 %576
        %vm578 = vcmask 64512
        %v580 = vsel %vm578, %v567, 0
        %v583 = vsel %vm578, %v577, 0
        %585 = vmatprep.subr.bf16.mxu0 0
        %586 = vmatpush1.bf16.xpose.msra.mxu0 %v583
        %587 = vmatprep.subr.bf16.mxu0 0
        %588 = vmatpush1.bf16.xpose.msra.mxu0 0
        %589 = vmatprep.subr.bf16.mxu0 0
        %590 = vmatpush1.bf16.xpose.msra.mxu0 0
        %591 = vmatprep.subr.bf16.mxu0 0
        %592 = vmatpush1.bf16.xpose.msra.mxu0 0
        %593 = vmatprep.subr.bf16.mxu0 0
        %594 = vmatpush1.bf16.xpose.msra.mxu0 0
        %595 = vmatprep.subr.bf16.mxu0 0
        %596 = vmatpush1.bf16.xpose.msra.mxu0 0
        %597 = vmatprep.subr.bf16.mxu0 0
        %598 = vmatpush1.bf16.xpose.msra.mxu0 0
        %599 = vmatprep.subr.bf16.mxu0 0
        %600 = vmatpush1.bf16.xpose.msra.mxu0 0
        %601 = vmatprep.subr.bf16.mxu0 0
        %602 = vmatpush1.bf16.xpose.msra.mxu0 0
        %603 = vmatprep.subr.bf16.mxu0 0
        %604 = vmatpush1.bf16.xpose.msra.mxu0 0
        %605 = vmatprep.subr.bf16.mxu0 0
        %606 = vmatpush1.bf16.xpose.msra.mxu0 0
        %607 = vmatprep.subr.bf16.mxu0 0
        %608 = vmatpush1.bf16.xpose.msra.mxu0 0
        %609 = vmatprep.subr.bf16.mxu0 0
        %610 = vmatpush1.bf16.xpose.msra.mxu0 0
        %611 = vmatprep.subr.bf16.mxu0 0
        %612 = vmatpush1.bf16.xpose.msra.mxu0 0
        %613 = vmatprep.subr.bf16.mxu0 0
        %614 = vmatpush1.bf16.xpose.msra.mxu0 0
        %615 = vmatprep.subr.bf16.mxu0 0
        %616 = vmatpush1.bf16.xpose.msra.mxu0 0
        %617 = vmatprep.mubr.bf16.mxu0 0
        %618 = vmatmul.mubr.bf16.gmra.mrb[0].mxu0 %v580
        %v619 = vpop.f32.mrb[0].mxu0
        %v620 = vadd.f32 0.0, %v619
        %v621 = vpop.f32.mrb[0].mxu0
        %v622 = vpop.f32.mrb[0].mxu0
        %v623 = vadd.f32 0.0, %v622
        %v624 = vpop.f32.mrb[0].mxu0
        %625 = vdwg.mxu0
        %627 = vrot.lane.b32.xlu0 %v568, 96
        %v628 = vpop.permute.xlu0 %627
        %v630 = vsel %vm578, %v568, 0
        %v633 = vsel %vm578, %v628, 0
        %635 = vmatprep.subr.bf16.mxu0 0
        %636 = vmatpush1.bf16.xpose.msra.mxu0 %v633
        %637 = vmatprep.subr.bf16.mxu0 0
        %638 = vmatpush1.bf16.xpose.msra.mxu0 0
        %639 = vmatprep.subr.bf16.mxu0 0
        %640 = vmatpush1.bf16.xpose.msra.mxu0 0
        %641 = vmatprep.subr.bf16.mxu0 0
        %642 = vmatpush1.bf16.xpose.msra.mxu0 0
        %643 = vmatprep.subr.bf16.mxu0 0
        %644 = vmatpush1.bf16.xpose.msra.mxu0 0
        %645 = vmatprep.subr.bf16.mxu0 0
        %646 = vmatpush1.bf16.xpose.msra.mxu0 0
        %647 = vmatprep.subr.bf16.mxu0 0
        %648 = vmatpush1.bf16.xpose.msra.mxu0 0
        %649 = vmatprep.subr.bf16.mxu0 0
        %650 = vmatpush1.bf16.xpose.msra.mxu0 0
        %651 = vmatprep.subr.bf16.mxu0 0
        %652 = vmatpush1.bf16.xpose.msra.mxu0 0
        %653 = vmatprep.subr.bf16.mxu0 0
        %654 = vmatpush1.bf16.xpose.msra.mxu0 0
        %655 = vmatprep.subr.bf16.mxu0 0
        %656 = vmatpush1.bf16.xpose.msra.mxu0 0
        %657 = vmatprep.subr.bf16.mxu0 0
        %658 = vmatpush1.bf16.xpose.msra.mxu0 0
        %659 = vmatprep.subr.bf16.mxu0 0
        %660 = vmatpush1.bf16.xpose.msra.mxu0 0
        %661 = vmatprep.subr.bf16.mxu0 0
        %662 = vmatpush1.bf16.xpose.msra.mxu0 0
        %663 = vmatprep.subr.bf16.mxu0 0
        %664 = vmatpush1.bf16.xpose.msra.mxu0 0
        %665 = vmatprep.subr.bf16.mxu0 0
        %666 = vmatpush1.bf16.xpose.msra.mxu0 0
        %667 = vmatprep.mubr.bf16.mxu0 0
        %668 = vmatmul.mubr.bf16.gmra.mrb[0].mxu0 %v630
        %v669 = vpop.f32.mrb[0].mxu0
        %v670 = vadd.f32 0.0, %v669
        %v671 = vpop.f32.mrb[0].mxu0
        %v672 = vpop.f32.mrb[0].mxu0
        %v673 = vadd.f32 0.0, %v672
        %v674 = vpop.f32.mrb[0].mxu0
        %675 = vdwg.mxu0
        %677 = vrot.lane.b32.xlu0 %v569, 96
        %v678 = vpop.permute.xlu0 %677
        %v680 = vsel %vm578, %v569, 0
        %v683 = vsel %vm578, %v678, 0
        %685 = vmatprep.subr.bf16.mxu0 0
        %686 = vmatpush1.bf16.xpose.msra.mxu0 %v683
        %687 = vmatprep.subr.bf16.mxu0 0
        %688 = vmatpush1.bf16.xpose.msra.mxu0 0
        %689 = vmatprep.subr.bf16.mxu0 0
        %690 = vmatpush1.bf16.xpose.msra.mxu0 0
        %691 = vmatprep.subr.bf16.mxu0 0
        %692 = vmatpush1.bf16.xpose.msra.mxu0 0
        %693 = vmatprep.subr.bf16.mxu0 0
        %694 = vmatpush1.bf16.xpose.msra.mxu0 0
        %695 = vmatprep.subr.bf16.mxu0 0
        %696 = vmatpush1.bf16.xpose.msra.mxu0 0
        %697 = vmatprep.subr.bf16.mxu0 0
        %698 = vmatpush1.bf16.xpose.msra.mxu0 0
        %699 = vmatprep.subr.bf16.mxu0 0
        %700 = vmatpush1.bf16.xpose.msra.mxu0 0
        %701 = vmatprep.subr.bf16.mxu0 0
        %702 = vmatpush1.bf16.xpose.msra.mxu0 0
        %703 = vmatprep.subr.bf16.mxu0 0
        %704 = vmatpush1.bf16.xpose.msra.mxu0 0
        %705 = vmatprep.subr.bf16.mxu0 0
        %706 = vmatpush1.bf16.xpose.msra.mxu0 0
        %707 = vmatprep.subr.bf16.mxu0 0
        %708 = vmatpush1.bf16.xpose.msra.mxu0 0
        %709 = vmatprep.subr.bf16.mxu0 0
        %710 = vmatpush1.bf16.xpose.msra.mxu0 0
        %711 = vmatprep.subr.bf16.mxu0 0
        %712 = vmatpush1.bf16.xpose.msra.mxu0 0
        %713 = vmatprep.subr.bf16.mxu0 0
        %714 = vmatpush1.bf16.xpose.msra.mxu0 0
        %715 = vmatprep.subr.bf16.mxu0 0
        %716 = vmatpush1.bf16.xpose.msra.mxu0 0
        %717 = vmatprep.mubr.bf16.mxu0 0
        %718 = vmatmul.mubr.bf16.gmra.mrb[0].mxu0 %v680
        %v719 = vpop.f32.mrb[0].mxu0
        %v720 = vadd.f32 0.0, %v719
        %v721 = vpop.f32.mrb[0].mxu0
        %v722 = vpop.f32.mrb[0].mxu0
        %v723 = vadd.f32 0.0, %v722
        %v724 = vpop.f32.mrb[0].mxu0
        %725 = vdwg.mxu0
        %727 = vrot.lane.b32.xlu0 %v570, 96
        %v728 = vpop.permute.xlu0 %727
        %v730 = vsel %vm578, %v570, 0
        %v733 = vsel %vm578, %v728, 0
        %735 = vmatprep.subr.bf16.mxu0 0
        %736 = vmatpush1.bf16.xpose.msra.mxu0 %v733
        %737 = vmatprep.subr.bf16.mxu0 0
        %738 = vmatpush1.bf16.xpose.msra.mxu0 0
        %739 = vmatprep.subr.bf16.mxu0 0
        %740 = vmatpush1.bf16.xpose.msra.mxu0 0
        %741 = vmatprep.subr.bf16.mxu0 0
        %742 = vmatpush1.bf16.xpose.msra.mxu0 0
        %743 = vmatprep.subr.bf16.mxu0 0
        %744 = vmatpush1.bf16.xpose.msra.mxu0 0
        %745 = vmatprep.subr.bf16.mxu0 0
        %746 = vmatpush1.bf16.xpose.msra.mxu0 0
        %747 = vmatprep.subr.bf16.mxu0 0
        %748 = vmatpush1.bf16.xpose.msra.mxu0 0
        %749 = vmatprep.subr.bf16.mxu0 0
        %750 = vmatpush1.bf16.xpose.msra.mxu0 0
        %751 = vmatprep.subr.bf16.mxu0 0
        %752 = vmatpush1.bf16.xpose.msra.mxu0 0
        %753 = vmatprep.subr.bf16.mxu0 0
        %754 = vmatpush1.bf16.xpose.msra.mxu0 0
        %755 = vmatprep.subr.bf16.mxu0 0
        %756 = vmatpush1.bf16.xpose.msra.mxu0 0
        %757 = vmatprep.subr.bf16.mxu0 0
        %758 = vmatpush1.bf16.xpose.msra.mxu0 0
        %759 = vmatprep.subr.bf16.mxu0 0
        %760 = vmatpush1.bf16.xpose.msra.mxu0 0
        %761 = vmatprep.subr.bf16.mxu0 0
        %762 = vmatpush1.bf16.xpose.msra.mxu0 0
        %763 = vmatprep.subr.bf16.mxu0 0
        %764 = vmatpush1.bf16.xpose.msra.mxu0 0
        %765 = vmatprep.subr.bf16.mxu0 0
        %766 = vmatpush1.bf16.xpose.msra.mxu0 0
        %767 = vmatprep.mubr.bf16.mxu0 0
        %768 = vmatmul.mubr.bf16.gmra.mrb[0].mxu0 %v730
        %v769 = vpop.f32.mrb[0].mxu0
        %v770 = vadd.f32 0.0, %v769
        %v771 = vpop.f32.mrb[0].mxu0
        %v772 = vpop.f32.mrb[0].mxu0
        %v773 = vadd.f32 0.0, %v772
        %v774 = vpop.f32.mrb[0].mxu0
        %775 = vdwg.mxu0
        %777 = vrot.lane.b32.xlu0 %v571, 96
        %v778 = vpop.permute.xlu0 %777
        %v780 = vsel %vm578, %v571, 0
        %v783 = vsel %vm578, %v778, 0
        %785 = vmatprep.subr.bf16.mxu0 0
        %786 = vmatpush1.bf16.xpose.msra.mxu0 %v783
        %787 = vmatprep.subr.bf16.mxu0 0
        %788 = vmatpush1.bf16.xpose.msra.mxu0 0
        %789 = vmatprep.subr.bf16.mxu0 0
        %790 = vmatpush1.bf16.xpose.msra.mxu0 0
        %791 = vmatprep.subr.bf16.mxu0 0
        %792 = vmatpush1.bf16.xpose.msra.mxu0 0
        %793 = vmatprep.subr.bf16.mxu0 0
        %794 = vmatpush1.bf16.xpose.msra.mxu0 0
        %795 = vmatprep.subr.bf16.mxu0 0
        %796 = vmatpush1.bf16.xpose.msra.mxu0 0
        %797 = vmatprep.subr.bf16.mxu0 0
        %798 = vmatpush1.bf16.xpose.msra.mxu0 0
        %799 = vmatprep.subr.bf16.mxu0 0
        %800 = vmatpush1.bf16.xpose.msra.mxu0 0
        %801 = vmatprep.subr.bf16.mxu0 0
        %802 = vmatpush1.bf16.xpose.msra.mxu0 0
        %803 = vmatprep.subr.bf16.mxu0 0
        %804 = vmatpush1.bf16.xpose.msra.mxu0 0
        %805 = vmatprep.subr.bf16.mxu0 0
        %806 = vmatpush1.bf16.xpose.msra.mxu0 0
        %807 = vmatprep.subr.bf16.mxu0 0
        %808 = vmatpush1.bf16.xpose.msra.mxu0 0
        %809 = vmatprep.subr.bf16.mxu0 0
        %810 = vmatpush1.bf16.xpose.msra.mxu0 0
        %811 = vmatprep.subr.bf16.mxu0 0
        %812 = vmatpush1.bf16.xpose.msra.mxu0 0
        %813 = vmatprep.subr.bf16.mxu0 0
        %814 = vmatpush1.bf16.xpose.msra.mxu0 0
        %815 = vmatprep.subr.bf16.mxu0 0
        %816 = vmatpush1.bf16.xpose.msra.mxu0 0
        %817 = vmatprep.mubr.bf16.mxu0 0
        %818 = vmatmul.mubr.bf16.gmra.mrb[0].mxu0 %v780
        %v819 = vpop.f32.mrb[0].mxu0
        %v820 = vadd.f32 0.0, %v819
        %v821 = vpop.f32.mrb[0].mxu0
        %v822 = vpop.f32.mrb[0].mxu0
        %v823 = vadd.f32 0.0, %v822
        %v824 = vpop.f32.mrb[0].mxu0
        %825 = vdwg.mxu0
        %827 = vrot.lane.b32.xlu0 %v572, 96
        %v828 = vpop.permute.xlu0 %827
        %v830 = vsel %vm578, %v572, 0
        %v833 = vsel %vm578, %v828, 0
        %835 = vmatprep.subr.bf16.mxu0 0
        %836 = vmatpush1.bf16.xpose.msra.mxu0 %v833
        %837 = vmatprep.subr.bf16.mxu0 0
        %838 = vmatpush1.bf16.xpose.msra.mxu0 0
        %839 = vmatprep.subr.bf16.mxu0 0
        %840 = vmatpush1.bf16.xpose.msra.mxu0 0
        %841 = vmatprep.subr.bf16.mxu0 0
        %842 = vmatpush1.bf16.xpose.msra.mxu0 0
        %843 = vmatprep.subr.bf16.mxu0 0
        %844 = vmatpush1.bf16.xpose.msra.mxu0 0
        %845 = vmatprep.subr.bf16.mxu0 0
        %846 = vmatpush1.bf16.xpose.msra.mxu0 0
        %847 = vmatprep.subr.bf16.mxu0 0
        %848 = vmatpush1.bf16.xpose.msra.mxu0 0
        %849 = vmatprep.subr.bf16.mxu0 0
        %850 = vmatpush1.bf16.xpose.msra.mxu0 0
        %851 = vmatprep.subr.bf16.mxu0 0
        %852 = vmatpush1.bf16.xpose.msra.mxu0 0
        %853 = vmatprep.subr.bf16.mxu0 0
        %854 = vmatpush1.bf16.xpose.msra.mxu0 0
        %855 = vmatprep.subr.bf16.mxu0 0
        %856 = vmatpush1.bf16.xpose.msra.mxu0 0
        %857 = vmatprep.subr.bf16.mxu0 0
        %858 = vmatpush1.bf16.xpose.msra.mxu0 0
        %859 = vmatprep.subr.bf16.mxu0 0
        %860 = vmatpush1.bf16.xpose.msra.mxu0 0
        %861 = vmatprep.subr.bf16.mxu0 0
        %862 = vmatpush1.bf16.xpose.msra.mxu0 0
        %863 = vmatprep.subr.bf16.mxu0 0
        %864 = vmatpush1.bf16.xpose.msra.mxu0 0
        %865 = vmatprep.subr.bf16.mxu0 0
        %866 = vmatpush1.bf16.xpose.msra.mxu0 0
        %867 = vmatprep.mubr.bf16.mxu0 0
        %868 = vmatmul.mubr.bf16.gmra.mrb[0].mxu0 %v830
        %v869 = vpop.f32.mrb[0].mxu0
        %v870 = vadd.f32 0.0, %v869
        %v871 = vpop.f32.mrb[0].mxu0
        %v872 = vpop.f32.mrb[0].mxu0
        %v873 = vadd.f32 0.0, %v872
        %v874 = vpop.f32.mrb[0].mxu0
        %875 = vdwg.mxu0
        %877 = vrot.lane.b32.xlu0 %v573, 96
        %v878 = vpop.permute.xlu0 %877
        %v880 = vsel %vm578, %v573, 0
        %v883 = vsel %vm578, %v878, 0
        %885 = vmatprep.subr.bf16.mxu0 0
        %886 = vmatpush1.bf16.xpose.msra.mxu0 %v883
        %887 = vmatprep.subr.bf16.mxu0 0
        %888 = vmatpush1.bf16.xpose.msra.mxu0 0
        %889 = vmatprep.subr.bf16.mxu0 0
        %890 = vmatpush1.bf16.xpose.msra.mxu0 0
        %891 = vmatprep.subr.bf16.mxu0 0
        %892 = vmatpush1.bf16.xpose.msra.mxu0 0
        %893 = vmatprep.subr.bf16.mxu0 0
        %894 = vmatpush1.bf16.xpose.msra.mxu0 0
        %895 = vmatprep.subr.bf16.mxu0 0
        %896 = vmatpush1.bf16.xpose.msra.mxu0 0
        %897 = vmatprep.subr.bf16.mxu0 0
        %898 = vmatpush1.bf16.xpose.msra.mxu0 0
        %899 = vmatprep.subr.bf16.mxu0 0
        %900 = vmatpush1.bf16.xpose.msra.mxu0 0
        %901 = vmatprep.subr.bf16.mxu0 0
        %902 = vmatpush1.bf16.xpose.msra.mxu0 0
        %903 = vmatprep.subr.bf16.mxu0 0
        %904 = vmatpush1.bf16.xpose.msra.mxu0 0
        %905 = vmatprep.subr.bf16.mxu0 0
        %906 = vmatpush1.bf16.xpose.msra.mxu0 0
        %907 = vmatprep.subr.bf16.mxu0 0
        %908 = vmatpush1.bf16.xpose.msra.mxu0 0
        %909 = vmatprep.subr.bf16.mxu0 0
        %910 = vmatpush1.bf16.xpose.msra.mxu0 0
        %911 = vmatprep.subr.bf16.mxu0 0
        %912 = vmatpush1.bf16.xpose.msra.mxu0 0
        %913 = vmatprep.subr.bf16.mxu0 0
        %914 = vmatpush1.bf16.xpose.msra.mxu0 0
        %915 = vmatprep.subr.bf16.mxu0 0
        %916 = vmatpush1.bf16.xpose.msra.mxu0 0
        %917 = vmatprep.mubr.bf16.mxu0 0
        %918 = vmatmul.mubr.bf16.gmra.mrb[0].mxu0 %v880
        %v919 = vpop.f32.mrb[0].mxu0
        %v920 = vadd.f32 0.0, %v919
        %v921 = vpop.f32.mrb[0].mxu0
        %v922 = vpop.f32.mrb[0].mxu0
        %v923 = vadd.f32 0.0, %v922
        %v924 = vpop.f32.mrb[0].mxu0
        %925 = vdwg.mxu0
        %927 = vrot.lane.b32.xlu0 %v574, 96
        %v928 = vpop.permute.xlu0 %927
        %v930 = vsel %vm578, %v574, 0
        %v933 = vsel %vm578, %v928, 0
        %935 = vmatprep.subr.bf16.mxu0 0
        %936 = vmatpush1.bf16.xpose.msra.mxu0 %v933
        %937 = vmatprep.subr.bf16.mxu0 0
        %938 = vmatpush1.bf16.xpose.msra.mxu0 0
        %939 = vmatprep.subr.bf16.mxu0 0
        %940 = vmatpush1.bf16.xpose.msra.mxu0 0
        %941 = vmatprep.subr.bf16.mxu0 0
        %942 = vmatpush1.bf16.xpose.msra.mxu0 0
        %943 = vmatprep.subr.bf16.mxu0 0
        %944 = vmatpush1.bf16.xpose.msra.mxu0 0
        %945 = vmatprep.subr.bf16.mxu0 0
        %946 = vmatpush1.bf16.xpose.msra.mxu0 0
        %947 = vmatprep.subr.bf16.mxu0 0
        %948 = vmatpush1.bf16.xpose.msra.mxu0 0
        %949 = vmatprep.subr.bf16.mxu0 0
        %950 = vmatpush1.bf16.xpose.msra.mxu0 0
        %951 = vmatprep.subr.bf16.mxu0 0
        %952 = vmatpush1.bf16.xpose.msra.mxu0 0
        %953 = vmatprep.subr.bf16.mxu0 0
        %954 = vmatpush1.bf16.xpose.msra.mxu0 0
        %955 = vmatprep.subr.bf16.mxu0 0
        %956 = vmatpush1.bf16.xpose.msra.mxu0 0
        %957 = vmatprep.subr.bf16.mxu0 0
        %958 = vmatpush1.bf16.xpose.msra.mxu0 0
        %959 = vmatprep.subr.bf16.mxu0 0
        %960 = vmatpush1.bf16.xpose.msra.mxu0 0
        %961 = vmatprep.subr.bf16.mxu0 0
        %962 = vmatpush1.bf16.xpose.msra.mxu0 0
        %963 = vmatprep.subr.bf16.mxu0 0
        %964 = vmatpush1.bf16.xpose.msra.mxu0 0
        %965 = vmatprep.subr.bf16.mxu0 0
        %966 = vmatpush1.bf16.xpose.msra.mxu0 0
        %967 = vmatprep.mubr.bf16.mxu0 0
        %968 = vmatmul.mubr.bf16.gmra.mrb[0].mxu0 %v930
        %v969 = vpop.f32.mrb[0].mxu0
        %v970 = vadd.f32 0.0, %v969
        %v971 = vpop.f32.mrb[0].mxu0
        %v972 = vpop.f32.mrb[0].mxu0
        %v973 = vadd.f32 0.0, %v972
        %v974 = vpop.f32.mrb[0].mxu0
        %975 = vdwg.mxu0
        %vm976 = vcmask 130048
        %v977 = vsel %vm976, %v620, -inf
        %978 = vmax.xlane.f32.xlu0 %v977
        %v979 = vpop.xlane.xlu0 %978
        %v980 = vsel %vm976, %v623, -inf
        %981 = vmax.xlane.f32.xlu0 %v980
        %v982 = vpop.xlane.xlu0 %981
        %v983 = vsel %vm976, %v670, -inf
        %984 = vmax.xlane.f32.xlu0 %v983
        %v985 = vpop.xlane.xlu0 %984
        %v986 = vsel %vm976, %v673, -inf
        %987 = vmax.xlane.f32.xlu0 %v986
        %v988 = vpop.xlane.xlu0 %987
        %v989 = vsel %vm976, %v720, -inf
        %990 = vmax.xlane.f32.xlu0 %v989
        %v991 = vpop.xlane.xlu0 %990
        %v992 = vsel %vm976, %v723, -inf
        %993 = vmax.xlane.f32.xlu0 %v992
        %v994 = vpop.xlane.xlu0 %993
        %v995 = vsel %vm976, %v770, -inf
        %996 = vmax.xlane.f32.xlu0 %v995
        %v997 = vpop.xlane.xlu0 %996
        %v998 = vsel %vm976, %v773, -inf
        %999 = vmax.xlane.f32.xlu0 %v998
        %v1000 = vpop.xlane.xlu0 %999
        %v1001 = vsel %vm976, %v820, -inf
        %1002 = vmax.xlane.f32.xlu0 %v1001
        %v1003 = vpop.xlane.xlu0 %1002
        %v1004 = vsel %vm976, %v823, -inf
        %1005 = vmax.xlane.f32.xlu0 %v1004
        %v1006 = vpop.xlane.xlu0 %1005
        %v1007 = vsel %vm976, %v870, -inf
        %1008 = vmax.xlane.f32.xlu0 %v1007
        %v1009 = vpop.xlane.xlu0 %1008
        %v1010 = vsel %vm976, %v873, -inf
        %1011 = vmax.xlane.f32.xlu0 %v1010
        %v1012 = vpop.xlane.xlu0 %1011
        %v1013 = vsel %vm976, %v920, -inf
        %1014 = vmax.xlane.f32.xlu0 %v1013
        %v1015 = vpop.xlane.xlu0 %1014
        %v1016 = vsel %vm976, %v923, -inf
        %1017 = vmax.xlane.f32.xlu0 %v1016
        %v1018 = vpop.xlane.xlu0 %1017
        %v1019 = vsel %vm976, %v970, -inf
        %1020 = vmax.xlane.f32.xlu0 %v1019
        %v1021 = vpop.xlane.xlu0 %1020
        %v1022 = vsel %vm976, %v973, -inf
        %1023 = vmax.xlane.f32.xlu0 %v1022
        %v1024 = vpop.xlane.xlu0 %1023
        %v1025 = vsub.f32 %v620, %v979
        %v1026 = vsub.f32 %v623, %v982
        %v1027 = vsub.f32 %v670, %v985
        %v1028 = vsub.f32 %v673, %v988
        %v1029 = vsub.f32 %v720, %v991
        %v1030 = vsub.f32 %v723, %v994
        %v1031 = vsub.f32 %v770, %v997
        %v1032 = vsub.f32 %v773, %v1000
        %v1033 = vsub.f32 %v820, %v1003
        %v1034 = vsub.f32 %v823, %v1006
        %v1035 = vsub.f32 %v870, %v1009
        %v1036 = vsub.f32 %v873, %v1012
        %v1037 = vsub.f32 %v920, %v1015
        %v1038 = vsub.f32 %v923, %v1018
        %v1039 = vsub.f32 %v970, %v1021
        %v1040 = vsub.f32 %v973, %v1024
        %v1041 = vmul.f32 %v1025, 1.442695
        %v1042 = vpow.pop %v1041
        %v1043 = vmul.f32 %v1026, 1.442695
        %v1044 = vpow.pop %v1043
        %v1045 = vmul.f32 %v1027, 1.442695
        %v1046 = vpow.pop %v1045
        %v1047 = vmul.f32 %v1028, 1.442695
        %v1048 = vpow.pop %v1047
        %v1049 = vmul.f32 %v1029, 1.442695
        %v1050 = vpow.pop %v1049
        %v1051 = vmul.f32 %v1030, 1.442695
        %v1052 = vpow.pop %v1051
        %v1053 = vmul.f32 %v1031, 1.442695
        %v1054 = vpow.pop %v1053
        %v1055 = vmul.f32 %v1032, 1.442695
        %v1056 = vpow.pop %v1055
        %v1057 = vmul.f32 %v1033, 1.442695
        %v1058 = vpow.pop %v1057
        %v1059 = vmul.f32 %v1034, 1.442695
        %v1060 = vpow.pop %v1059
        %v1061 = vmul.f32 %v1035, 1.442695
        %v1062 = vpow.pop %v1061
        %v1063 = vmul.f32 %v1036, 1.442695
        %v1064 = vpow.pop %v1063
        %v1065 = vmul.f32 %v1037, 1.442695
        %v1066 = vpow.pop %v1065
        %v1067 = vmul.f32 %v1038, 1.442695
        %v1068 = vpow.pop %v1067
        %v1069 = vmul.f32 %v1039, 1.442695
        %v1070 = vpow.pop %v1069
        %v1071 = vmul.f32 %v1040, 1.442695
        %v1072 = vpow.pop %v1071
        %v1073 = vsel %vm976, %v1042, 0.0
        %1074 = vadd.xlane.f32.xlu0 %v1073
        %v1075 = vpop.xlane.xlu0 %1074
        %v1076 = vsel %vm976, %v1044, 0.0
        %1077 = vadd.xlane.f32.xlu0 %v1076
        %v1078 = vpop.xlane.xlu0 %1077
        %v1079 = vsel %vm976, %v1046, 0.0
        %1080 = vadd.xlane.f32.xlu0 %v1079
        %v1081 = vpop.xlane.xlu0 %1080
        %v1082 = vsel %vm976, %v1048, 0.0
        %1083 = vadd.xlane.f32.xlu0 %v1082
        %v1084 = vpop.xlane.xlu0 %1083
        %v1085 = vsel %vm976, %v1050, 0.0
        %1086 = vadd.xlane.f32.xlu0 %v1085
        %v1087 = vpop.xlane.xlu0 %1086
        %v1088 = vsel %vm976, %v1052, 0.0
        %1089 = vadd.xlane.f32.xlu0 %v1088
        %v1090 = vpop.xlane.xlu0 %1089
        %v1091 = vsel %vm976, %v1054, 0.0
        %1092 = vadd.xlane.f32.xlu0 %v1091
        %v1093 = vpop.xlane.xlu0 %1092
        %v1094 = vsel %vm976, %v1056, 0.0
        %1095 = vadd.xlane.f32.xlu0 %v1094
        %v1096 = vpop.xlane.xlu0 %1095
        %v1097 = vsel %vm976, %v1058, 0.0
        %1098 = vadd.xlane.f32.xlu0 %v1097
        %v1099 = vpop.xlane.xlu0 %1098
        %v1100 = vsel %vm976, %v1060, 0.0
        %1101 = vadd.xlane.f32.xlu0 %v1100
        %v1102 = vpop.xlane.xlu0 %1101
        %v1103 = vsel %vm976, %v1062, 0.0
        %1104 = vadd.xlane.f32.xlu0 %v1103
        %v1105 = vpop.xlane.xlu0 %1104
        %v1106 = vsel %vm976, %v1064, 0.0
        %1107 = vadd.xlane.f32.xlu0 %v1106
        %v1108 = vpop.xlane.xlu0 %1107
        %v1109 = vsel %vm976, %v1066, 0.0
        %1110 = vadd.xlane.f32.xlu0 %v1109
        %v1111 = vpop.xlane.xlu0 %1110
        %v1112 = vsel %vm976, %v1068, 0.0
        %1113 = vadd.xlane.f32.xlu0 %v1112
        %v1114 = vpop.xlane.xlu0 %1113
        %v1115 = vsel %vm976, %v1070, 0.0
        %1116 = vadd.xlane.f32.xlu0 %v1115
        %v1117 = vpop.xlane.xlu0 %1116
        %v1118 = vsel %vm976, %v1072, 0.0
        %1119 = vadd.xlane.f32.xlu0 %v1118
        %v1120 = vpop.xlane.xlu0 %1119
        %v1121 = vrcp.pop %v1075
        %v1122 = vrcp.pop %v1078
        %v1123 = vrcp.pop %v1081
        %v1124 = vrcp.pop %v1084
        %v1125 = vrcp.pop %v1087
        %v1126 = vrcp.pop %v1090
        %v1127 = vrcp.pop %v1093
        %v1128 = vrcp.pop %v1096
        %v1129 = vrcp.pop %v1099
        %v1130 = vrcp.pop %v1102
        %v1131 = vrcp.pop %v1105
        %v1132 = vrcp.pop %v1108
        %v1133 = vrcp.pop %v1111
        %v1134 = vrcp.pop %v1114
        %v1135 = vrcp.pop %v1117
        %v1136 = vrcp.pop %v1120
        %v1137 = vmul.f32 %v1042, %v1121
        %v1138 = vmul.f32 %v1044, %v1122
        %v1139 = vmul.f32 %v1046, %v1123
        %v1140 = vmul.f32 %v1048, %v1124
        %v1141 = vmul.f32 %v1050, %v1125
        %v1142 = vmul.f32 %v1052, %v1126
        %v1143 = vmul.f32 %v1054, %v1127
        %v1144 = vmul.f32 %v1056, %v1128
        %v1145 = vmul.f32 %v1058, %v1129
        %v1146 = vmul.f32 %v1060, %v1130
        %v1147 = vmul.f32 %v1062, %v1131
        %v1148 = vmul.f32 %v1064, %v1132
        %v1149 = vmul.f32 %v1066, %v1133
        %v1150 = vmul.f32 %v1068, %v1134
        %v1151 = vmul.f32 %v1070, %v1135
        %v1152 = vmul.f32 %v1072, %v1136
        %1153 = vst.msk [vmem:[%s362] sm:$0xff] %vm976, %v1137
        %1154 = vst.msk [vmem:[%s362 + $0x8] sm:$0xff] %vm976, %v1138
        %1155 = vst.msk [vmem:[%s362 + $0x40] sm:$0xff] %vm976, %v1139
        %1156 = vst.msk [vmem:[%s362 + $0x48] sm:$0xff] %vm976, %v1140
        %s1157 = scalar_lea.vmem %s362, 16 [#allocation9]
        %1158 = vst.msk [vmem:[%s1157] sm:$0xff] %vm976, %v1141
        %1159 = vst.msk [vmem:[%s1157 + $0x8] sm:$0xff] %vm976, %v1142
        %1160 = vst.msk [vmem:[%s1157 + $0x40] sm:$0xff] %vm976, %v1143
        %1161 = vst.msk [vmem:[%s1157 + $0x48] sm:$0xff] %vm976, %v1144
        %s1162 = scalar_lea.vmem %s362, 32 [#allocation9]
        %1163 = vst.msk [vmem:[%s1162] sm:$0xff] %vm976, %v1145
        %1164 = vst.msk [vmem:[%s1162 + $0x8] sm:$0xff] %vm976, %v1146
        %1165 = vst.msk [vmem:[%s1162 + $0x40] sm:$0xff] %vm976, %v1147
        %1166 = vst.msk [vmem:[%s1162 + $0x48] sm:$0xff] %vm976, %v1148
        %s1167 = scalar_lea.vmem %s362, 48 [#allocation9]
        %1168 = vst.msk [vmem:[%s1167] sm:$0xff] %vm976, %v1149
        %1169 = vst.msk [vmem:[%s1167 + $0x8] sm:$0xff] %vm976, %v1150
        %1170 = vst.msk [vmem:[%s1167 + $0x40] sm:$0xff] %vm976, %v1151
        %1171 = vst.msk [vmem:[%s1167 + $0x48] sm:$0xff] %vm976, %v1152
        %v1172 = vpack.c.bf16 %v1138, %v1137
        %v1173 = vpack.c.bf16 %v1140, %v1139
        %v1174 = vpack.c.bf16 %v1142, %v1141
        %v1175 = vpack.c.bf16 %v1144, %v1143
        %v1176 = vpack.c.bf16 %v1146, %v1145
        %v1177 = vpack.c.bf16 %v1148, %v1147
        %v1178 = vpack.c.bf16 %v1150, %v1149
        %v1179 = vpack.c.bf16 %v1152, %v1151
        %1180 = vrot.lane.b32.xlu0 %v567, 64
        %v1181 = vpop.permute.xlu0 %1180
        %v1184 = vsel %vm976, %v1172, 0
        %1186 = vmatprep.subr.bf16.mxu0 0
        %1187 = vmatpush1.bf16.msra.mxu0 %v1181
        %1188 = vmatprep.subr.bf16.mxu0 0
        %1189 = vmatpush1.bf16.msra.mxu0 0
        %1190 = vmatprep.subr.bf16.mxu0 0
        %1191 = vmatpush1.bf16.msra.mxu0 0
        %1192 = vmatprep.subr.bf16.mxu0 0
        %1193 = vmatpush1.bf16.msra.mxu0 0
        %1194 = vmatprep.subr.bf16.mxu0 0
        %1195 = vmatpush1.bf16.msra.mxu0 0
        %1196 = vmatprep.subr.bf16.mxu0 0
        %1197 = vmatpush1.bf16.msra.mxu0 0
        %1198 = vmatprep.subr.bf16.mxu0 0
        %1199 = vmatpush1.bf16.msra.mxu0 0
        %1200 = vmatprep.subr.bf16.mxu0 0
        %1201 = vmatpush1.bf16.msra.mxu0 0
        %1202 = vmatprep.subr.bf16.mxu0 0
        %1203 = vmatpush1.bf16.msra.mxu0 0
        %1204 = vmatprep.subr.bf16.mxu0 0
        %1205 = vmatpush1.bf16.msra.mxu0 0
        %1206 = vmatprep.subr.bf16.mxu0 0
        %1207 = vmatpush1.bf16.msra.mxu0 0
        %1208 = vmatprep.subr.bf16.mxu0 0
        %1209 = vmatpush1.bf16.msra.mxu0 0
        %1210 = vmatprep.subr.bf16.mxu0 0
        %1211 = vmatpush1.bf16.msra.mxu0 0
        %1212 = vmatprep.subr.bf16.mxu0 0
        %1213 = vmatpush1.bf16.msra.mxu0 0
        %1214 = vmatprep.subr.bf16.mxu0 0
        %1215 = vmatpush1.bf16.msra.mxu0 0
        %1216 = vmatprep.subr.bf16.mxu0 0
        %1217 = vmatpush1.bf16.msra.mxu0 0
        %1218 = vmatprep.mubr.bf16.mxu0 0
        %1219 = vmatmul.mubr.bf16.gmra.mrb[0].mxu0 %v1184
        %v1220 = vpop.f32.mrb[0].mxu0
        %v1221 = vadd.f32 0.0, %v1220
        %v1222 = vpop.f32.mrb[0].mxu0
        %v1223 = vpop.f32.mrb[0].mxu0
        %v1224 = vadd.f32 0.0, %v1223
        %v1225 = vpop.f32.mrb[0].mxu0
        %1226 = vdwg.mxu0
        %1227 = vrot.lane.b32.xlu0 %v568, 64
        %v1228 = vpop.permute.xlu0 %1227
        %v1231 = vsel %vm976, %v1173, 0
        %1233 = vmatprep.subr.bf16.mxu0 0
        %1234 = vmatpush1.bf16.msra.mxu0 %v1228
        %1235 = vmatprep.subr.bf16.mxu0 0
        %1236 = vmatpush1.bf16.msra.mxu0 0
        %1237 = vmatprep.subr.bf16.mxu0 0
        %1238 = vmatpush1.bf16.msra.mxu0 0
        %1239 = vmatprep.subr.bf16.mxu0 0
        %1240 = vmatpush1.bf16.msra.mxu0 0
        %1241 = vmatprep.subr.bf16.mxu0 0
        %1242 = vmatpush1.bf16.msra.mxu0 0
        %1243 = vmatprep.subr.bf16.mxu0 0
        %1244 = vmatpush1.bf16.msra.mxu0 0
        %1245 = vmatprep.subr.bf16.mxu0 0
        %1246 = vmatpush1.bf16.msra.mxu0 0
        %1247 = vmatprep.subr.bf16.mxu0 0
        %1248 = vmatpush1.bf16.msra.mxu0 0
        %1249 = vmatprep.subr.bf16.mxu0 0
        %1250 = vmatpush1.bf16.msra.mxu0 0
        %1251 = vmatprep.subr.bf16.mxu0 0
        %1252 = vmatpush1.bf16.msra.mxu0 0
        %1253 = vmatprep.subr.bf16.mxu0 0
        %1254 = vmatpush1.bf16.msra.mxu0 0
        %1255 = vmatprep.subr.bf16.mxu0 0
        %1256 = vmatpush1.bf16.msra.mxu0 0
        %1257 = vmatprep.subr.bf16.mxu0 0
        %1258 = vmatpush1.bf16.msra.mxu0 0
        %1259 = vmatprep.subr.bf16.mxu0 0
        %1260 = vmatpush1.bf16.msra.mxu0 0
        %1261 = vmatprep.subr.bf16.mxu0 0
        %1262 = vmatpush1.bf16.msra.mxu0 0
        %1263 = vmatprep.subr.bf16.mxu0 0
        %1264 = vmatpush1.bf16.msra.mxu0 0
        %1265 = vmatprep.mubr.bf16.mxu0 0
        %1266 = vmatmul.mubr.bf16.gmra.mrb[0].mxu0 %v1231
        %v1267 = vpop.f32.mrb[0].mxu0
        %v1268 = vadd.f32 0.0, %v1267
        %v1269 = vpop.f32.mrb[0].mxu0
        %v1270 = vpop.f32.mrb[0].mxu0
        %v1271 = vadd.f32 0.0, %v1270
        %v1272 = vpop.f32.mrb[0].mxu0
        %1273 = vdwg.mxu0
        %1274 = vrot.lane.b32.xlu0 %v569, 64
        %v1275 = vpop.permute.xlu0 %1274
        %v1278 = vsel %vm976, %v1174, 0
        %1280 = vmatprep.subr.bf16.mxu0 0
        %1281 = vmatpush1.bf16.msra.mxu0 %v1275
        %1282 = vmatprep.subr.bf16.mxu0 0
        %1283 = vmatpush1.bf16.msra.mxu0 0
        %1284 = vmatprep.subr.bf16.mxu0 0
        %1285 = vmatpush1.bf16.msra.mxu0 0
        %1286 = vmatprep.subr.bf16.mxu0 0
        %1287 = vmatpush1.bf16.msra.mxu0 0
        %1288 = vmatprep.subr.bf16.mxu0 0
        %1289 = vmatpush1.bf16.msra.mxu0 0
        %1290 = vmatprep.subr.bf16.mxu0 0
        %1291 = vmatpush1.bf16.msra.mxu0 0
        %1292 = vmatprep.subr.bf16.mxu0 0
        %1293 = vmatpush1.bf16.msra.mxu0 0
        %1294 = vmatprep.subr.bf16.mxu0 0
        %1295 = vmatpush1.bf16.msra.mxu0 0
        %1296 = vmatprep.subr.bf16.mxu0 0
        %1297 = vmatpush1.bf16.msra.mxu0 0
        %1298 = vmatprep.subr.bf16.mxu0 0
        %1299 = vmatpush1.bf16.msra.mxu0 0
        %1300 = vmatprep.subr.bf16.mxu0 0
        %1301 = vmatpush1.bf16.msra.mxu0 0
        %1302 = vmatprep.subr.bf16.mxu0 0
        %1303 = vmatpush1.bf16.msra.mxu0 0
        %1304 = vmatprep.subr.bf16.mxu0 0
        %1305 = vmatpush1.bf16.msra.mxu0 0
        %1306 = vmatprep.subr.bf16.mxu0 0
        %1307 = vmatpush1.bf16.msra.mxu0 0
        %1308 = vmatprep.subr.bf16.mxu0 0
        %1309 = vmatpush1.bf16.msra.mxu0 0
        %1310 = vmatprep.subr.bf16.mxu0 0
        %1311 = vmatpush1.bf16.msra.mxu0 0
        %1312 = vmatprep.mubr.bf16.mxu0 0
        %1313 = vmatmul.mubr.bf16.gmra.mrb[0].mxu0 %v1278
        %v1314 = vpop.f32.mrb[0].mxu0
        %v1315 = vadd.f32 0.0, %v1314
        %v1316 = vpop.f32.mrb[0].mxu0
        %v1317 = vpop.f32.mrb[0].mxu0
        %v1318 = vadd.f32 0.0, %v1317
        %v1319 = vpop.f32.mrb[0].mxu0
        %1320 = vdwg.mxu0
        %1321 = vrot.lane.b32.xlu0 %v570, 64
        %v1322 = vpop.permute.xlu0 %1321
        %v1325 = vsel %vm976, %v1175, 0
        %1327 = vmatprep.subr.bf16.mxu0 0
        %1328 = vmatpush1.bf16.msra.mxu0 %v1322
        %1329 = vmatprep.subr.bf16.mxu0 0
        %1330 = vmatpush1.bf16.msra.mxu0 0
        %1331 = vmatprep.subr.bf16.mxu0 0
        %1332 = vmatpush1.bf16.msra.mxu0 0
        %1333 = vmatprep.subr.bf16.mxu0 0
        %1334 = vmatpush1.bf16.msra.mxu0 0
        %1335 = vmatprep.subr.bf16.mxu0 0
        %1336 = vmatpush1.bf16.msra.mxu0 0
        %1337 = vmatprep.subr.bf16.mxu0 0
        %1338 = vmatpush1.bf16.msra.mxu0 0
        %1339 = vmatprep.subr.bf16.mxu0 0
        %1340 = vmatpush1.bf16.msra.mxu0 0
        %1341 = vmatprep.subr.bf16.mxu0 0
        %1342 = vmatpush1.bf16.msra.mxu0 0
        %1343 = vmatprep.subr.bf16.mxu0 0
        %1344 = vmatpush1.bf16.msra.mxu0 0
        %1345 = vmatprep.subr.bf16.mxu0 0
        %1346 = vmatpush1.bf16.msra.mxu0 0
        %1347 = vmatprep.subr.bf16.mxu0 0
        %1348 = vmatpush1.bf16.msra.mxu0 0
        %1349 = vmatprep.subr.bf16.mxu0 0
        %1350 = vmatpush1.bf16.msra.mxu0 0
        %1351 = vmatprep.subr.bf16.mxu0 0
        %1352 = vmatpush1.bf16.msra.mxu0 0
        %1353 = vmatprep.subr.bf16.mxu0 0
        %1354 = vmatpush1.bf16.msra.mxu0 0
        %1355 = vmatprep.subr.bf16.mxu0 0
        %1356 = vmatpush1.bf16.msra.mxu0 0
        %1357 = vmatprep.subr.bf16.mxu0 0
        %1358 = vmatpush1.bf16.msra.mxu0 0
        %1359 = vmatprep.mubr.bf16.mxu0 0
        %1360 = vmatmul.mubr.bf16.gmra.mrb[0].mxu0 %v1325
        %v1361 = vpop.f32.mrb[0].mxu0
        %v1362 = vadd.f32 0.0, %v1361
        %v1363 = vpop.f32.mrb[0].mxu0
        %v1364 = vpop.f32.mrb[0].mxu0
        %v1365 = vadd.f32 0.0, %v1364
        %v1366 = vpop.f32.mrb[0].mxu0
        %1367 = vdwg.mxu0
        %1368 = vrot.lane.b32.xlu0 %v571, 64
        %v1369 = vpop.permute.xlu0 %1368
        %v1372 = vsel %vm976, %v1176, 0
        %1374 = vmatprep.subr.bf16.mxu0 0
        %1375 = vmatpush1.bf16.msra.mxu0 %v1369
        %1376 = vmatprep.subr.bf16.mxu0 0
        %1377 = vmatpush1.bf16.msra.mxu0 0
        %1378 = vmatprep.subr.bf16.mxu0 0
        %1379 = vmatpush1.bf16.msra.mxu0 0
        %1380 = vmatprep.subr.bf16.mxu0 0
        %1381 = vmatpush1.bf16.msra.mxu0 0
        %1382 = vmatprep.subr.bf16.mxu0 0
        %1383 = vmatpush1.bf16.msra.mxu0 0
        %1384 = vmatprep.subr.bf16.mxu0 0
        %1385 = vmatpush1.bf16.msra.mxu0 0
        %1386 = vmatprep.subr.bf16.mxu0 0
        %1387 = vmatpush1.bf16.msra.mxu0 0
        %1388 = vmatprep.subr.bf16.mxu0 0
        %1389 = vmatpush1.bf16.msra.mxu0 0
        %1390 = vmatprep.subr.bf16.mxu0 0
        %1391 = vmatpush1.bf16.msra.mxu0 0
        %1392 = vmatprep.subr.bf16.mxu0 0
        %1393 = vmatpush1.bf16.msra.mxu0 0
        %1394 = vmatprep.subr.bf16.mxu0 0
        %1395 = vmatpush1.bf16.msra.mxu0 0
        %1396 = vmatprep.subr.bf16.mxu0 0
        %1397 = vmatpush1.bf16.msra.mxu0 0
        %1398 = vmatprep.subr.bf16.mxu0 0
        %1399 = vmatpush1.bf16.msra.mxu0 0
        %1400 = vmatprep.subr.bf16.mxu0 0
        %1401 = vmatpush1.bf16.msra.mxu0 0
        %1402 = vmatprep.subr.bf16.mxu0 0
        %1403 = vmatpush1.bf16.msra.mxu0 0
        %1404 = vmatprep.subr.bf16.mxu0 0
        %1405 = vmatpush1.bf16.msra.mxu0 0
        %1406 = vmatprep.mubr.bf16.mxu0 0
        %1407 = vmatmul.mubr.bf16.gmra.mrb[0].mxu0 %v1372
        %v1408 = vpop.f32.mrb[0].mxu0
        %v1409 = vadd.f32 0.0, %v1408
        %v1410 = vpop.f32.mrb[0].mxu0
        %v1411 = vpop.f32.mrb[0].mxu0
        %v1412 = vadd.f32 0.0, %v1411
        %v1413 = vpop.f32.mrb[0].mxu0
        %1414 = vdwg.mxu0
        %1415 = vrot.lane.b32.xlu0 %v572, 64
        %v1416 = vpop.permute.xlu0 %1415
        %v1419 = vsel %vm976, %v1177, 0
        %1421 = vmatprep.subr.bf16.mxu0 0
        %1422 = vmatpush1.bf16.msra.mxu0 %v1416
        %1423 = vmatprep.subr.bf16.mxu0 0
        %1424 = vmatpush1.bf16.msra.mxu0 0
        %1425 = vmatprep.subr.bf16.mxu0 0
        %1426 = vmatpush1.bf16.msra.mxu0 0
        %1427 = vmatprep.subr.bf16.mxu0 0
        %1428 = vmatpush1.bf16.msra.mxu0 0
        %1429 = vmatprep.subr.bf16.mxu0 0
        %1430 = vmatpush1.bf16.msra.mxu0 0
        %1431 = vmatprep.subr.bf16.mxu0 0
        %1432 = vmatpush1.bf16.msra.mxu0 0
        %1433 = vmatprep.subr.bf16.mxu0 0
        %1434 = vmatpush1.bf16.msra.mxu0 0
        %1435 = vmatprep.subr.bf16.mxu0 0
        %1436 = vmatpush1.bf16.msra.mxu0 0
        %1437 = vmatprep.subr.bf16.mxu0 0
        %1438 = vmatpush1.bf16.msra.mxu0 0
        %1439 = vmatprep.subr.bf16.mxu0 0
        %1440 = vmatpush1.bf16.msra.mxu0 0
        %1441 = vmatprep.subr.bf16.mxu0 0
        %1442 = vmatpush1.bf16.msra.mxu0 0
        %1443 = vmatprep.subr.bf16.mxu0 0
        %1444 = vmatpush1.bf16.msra.mxu0 0
        %1445 = vmatprep.subr.bf16.mxu0 0
        %1446 = vmatpush1.bf16.msra.mxu0 0
        %1447 = vmatprep.subr.bf16.mxu0 0
        %1448 = vmatpush1.bf16.msra.mxu0 0
        %1449 = vmatprep.subr.bf16.mxu0 0
        %1450 = vmatpush1.bf16.msra.mxu0 0
        %1451 = vmatprep.subr.bf16.mxu0 0
        %1452 = vmatpush1.bf16.msra.mxu0 0
        %1453 = vmatprep.mubr.bf16.mxu0 0
        %1454 = vmatmul.mubr.bf16.gmra.mrb[0].mxu0 %v1419
        %v1455 = vpop.f32.mrb[0].mxu0
        %v1456 = vadd.f32 0.0, %v1455
        %v1457 = vpop.f32.mrb[0].mxu0
        %v1458 = vpop.f32.mrb[0].mxu0
        %v1459 = vadd.f32 0.0, %v1458
        %v1460 = vpop.f32.mrb[0].mxu0
        %1461 = vdwg.mxu0
        %1462 = vrot.lane.b32.xlu0 %v573, 64
        %v1463 = vpop.permute.xlu0 %1462
        %v1466 = vsel %vm976, %v1178, 0
        %1468 = vmatprep.subr.bf16.mxu0 0
        %1469 = vmatpush1.bf16.msra.mxu0 %v1463
        %1470 = vmatprep.subr.bf16.mxu0 0
        %1471 = vmatpush1.bf16.msra.mxu0 0
        %1472 = vmatprep.subr.bf16.mxu0 0
        %1473 = vmatpush1.bf16.msra.mxu0 0
        %1474 = vmatprep.subr.bf16.mxu0 0
        %1475 = vmatpush1.bf16.msra.mxu0 0
        %1476 = vmatprep.subr.bf16.mxu0 0
        %1477 = vmatpush1.bf16.msra.mxu0 0
        %1478 = vmatprep.subr.bf16.mxu0 0
        %1479 = vmatpush1.bf16.msra.mxu0 0
        %1480 = vmatprep.subr.bf16.mxu0 0
        %1481 = vmatpush1.bf16.msra.mxu0 0
        %1482 = vmatprep.subr.bf16.mxu0 0
        %1483 = vmatpush1.bf16.msra.mxu0 0
        %1484 = vmatprep.subr.bf16.mxu0 0
        %1485 = vmatpush1.bf16.msra.mxu0 0
        %1486 = vmatprep.subr.bf16.mxu0 0
        %1487 = vmatpush1.bf16.msra.mxu0 0
        %1488 = vmatprep.subr.bf16.mxu0 0
        %1489 = vmatpush1.bf16.msra.mxu0 0
        %1490 = vmatprep.subr.bf16.mxu0 0
        %1491 = vmatpush1.bf16.msra.mxu0 0
        %1492 = vmatprep.subr.bf16.mxu0 0
        %1493 = vmatpush1.bf16.msra.mxu0 0
        %1494 = vmatprep.subr.bf16.mxu0 0
        %1495 = vmatpush1.bf16.msra.mxu0 0
        %1496 = vmatprep.subr.bf16.mxu0 0
        %1497 = vmatpush1.bf16.msra.mxu0 0
        %1498 = vmatprep.subr.bf16.mxu0 0
        %1499 = vmatpush1.bf16.msra.mxu0 0
        %1500 = vmatprep.mubr.bf16.mxu0 0
        %1501 = vmatmul.mubr.bf16.gmra.mrb[0].mxu0 %v1466
        %v1502 = vpop.f32.mrb[0].mxu0
        %v1503 = vadd.f32 0.0, %v1502
        %v1504 = vpop.f32.mrb[0].mxu0
        %v1505 = vpop.f32.mrb[0].mxu0
        %v1506 = vadd.f32 0.0, %v1505
        %v1507 = vpop.f32.mrb[0].mxu0
        %1508 = vdwg.mxu0
        %1509 = vrot.lane.b32.xlu0 %v574, 64
        %v1510 = vpop.permute.xlu0 %1509
        %v1513 = vsel %vm976, %v1179, 0
        %1515 = vmatprep.subr.bf16.mxu0 0
        %1516 = vmatpush1.bf16.msra.mxu0 %v1510
        %1517 = vmatprep.subr.bf16.mxu0 0
        %1518 = vmatpush1.bf16.msra.mxu0 0
        %1519 = vmatprep.subr.bf16.mxu0 0
        %1520 = vmatpush1.bf16.msra.mxu0 0
        %1521 = vmatprep.subr.bf16.mxu0 0
        %1522 = vmatpush1.bf16.msra.mxu0 0
        %1523 = vmatprep.subr.bf16.mxu0 0
        %1524 = vmatpush1.bf16.msra.mxu0 0
        %1525 = vmatprep.subr.bf16.mxu0 0
        %1526 = vmatpush1.bf16.msra.mxu0 0
        %1527 = vmatprep.subr.bf16.mxu0 0
        %1528 = vmatpush1.bf16.msra.mxu0 0
        %1529 = vmatprep.subr.bf16.mxu0 0
        %1530 = vmatpush1.bf16.msra.mxu0 0
        %1531 = vmatprep.subr.bf16.mxu0 0
        %1532 = vmatpush1.bf16.msra.mxu0 0
        %1533 = vmatprep.subr.bf16.mxu0 0
        %1534 = vmatpush1.bf16.msra.mxu0 0
        %1535 = vmatprep.subr.bf16.mxu0 0
        %1536 = vmatpush1.bf16.msra.mxu0 0
        %1537 = vmatprep.subr.bf16.mxu0 0
        %1538 = vmatpush1.bf16.msra.mxu0 0
        %1539 = vmatprep.subr.bf16.mxu0 0
        %1540 = vmatpush1.bf16.msra.mxu0 0
        %1541 = vmatprep.subr.bf16.mxu0 0
        %1542 = vmatpush1.bf16.msra.mxu0 0
        %1543 = vmatprep.subr.bf16.mxu0 0
        %1544 = vmatpush1.bf16.msra.mxu0 0
        %1545 = vmatprep.subr.bf16.mxu0 0
        %1546 = vmatpush1.bf16.msra.mxu0 0
        %1547 = vmatprep.mubr.bf16.mxu0 0
        %1548 = vmatmul.mubr.bf16.gmra.mrb[0].mxu0 %v1513
        %v1549 = vpop.f32.mrb[0].mxu0
        %v1550 = vadd.f32 0.0, %v1549
        %v1551 = vpop.f32.mrb[0].mxu0
        %v1552 = vpop.f32.mrb[0].mxu0
        %v1553 = vadd.f32 0.0, %v1552
        %v1554 = vpop.f32.mrb[0].mxu0
        %1555 = vdwg.mxu0
        %1560 = vrot.lane.b32.xlu0 %v1315, 8
        %v1561 = vpop.permute.xlu0 %1560
        %1562 = vrot.lane.b32.xlu0 %v1318, 8
        %v1563 = vpop.permute.xlu0 %1562
        %1564 = vrot.lane.b32.xlu0 %v1362, 8
        %v1565 = vpop.permute.xlu0 %1564
        %1566 = vrot.lane.b32.xlu0 %v1365, 8
        %v1567 = vpop.permute.xlu0 %1566
        %1576 = vrot.lane.b32.xlu0 %v1409, 16
        %v1577 = vpop.permute.xlu0 %1576
        %1578 = vrot.lane.b32.xlu0 %v1412, 16
        %v1579 = vpop.permute.xlu0 %1578
        %1580 = vrot.lane.b32.xlu0 %v1456, 16
        %v1581 = vpop.permute.xlu0 %1580
        %1582 = vrot.lane.b32.xlu0 %v1459, 16
        %v1583 = vpop.permute.xlu0 %1582
        %1592 = vrot.lane.b32.xlu0 %v1503, 24
        %v1593 = vpop.permute.xlu0 %1592
        %1594 = vrot.lane.b32.xlu0 %v1506, 24
        %v1595 = vpop.permute.xlu0 %1594
        %1596 = vrot.lane.b32.xlu0 %v1550, 24
        %v1597 = vpop.permute.xlu0 %1596
        %1598 = vrot.lane.b32.xlu0 %v1553, 24
        %v1599 = vpop.permute.xlu0 %1598
        %v1604 = vsel %vm578, %v1221, %v1561
        %v1605 = vsel %vm578, %v1224, %v1563
        %v1606 = vsel %vm578, %v1268, %v1565
        %v1607 = vsel %vm578, %v1271, %v1567
        %v1608 = vsel %vm976, %v1604, %v1577
        %v1609 = vsel %vm976, %v1605, %v1579
        %v1610 = vsel %vm976, %v1606, %v1581
        %v1611 = vsel %vm976, %v1607, %v1583
        %vm1612 = vcmask 195584
        %v1613 = vsel %vm1612, %v1608, %v1593
        %v1614 = vsel %vm1612, %v1609, %v1595
        %v1615 = vsel %vm1612, %v1610, %v1597
        %v1616 = vsel %vm1612, %v1611, %v1599
        %v1617 = vpack.c.bf16 %v1614, %v1613
        %v1618 = vpack.c.bf16 %v1616, %v1615
        %v1619 = vld [vmem:[%s5] sm:$0xf]
        %v1620 = vld [vmem:[%s5 + $0x4] sm:$0xf]
        %v1621 = vld [vmem:[%s5 + $0x8] sm:$0xf]
        %v1622 = vld [vmem:[%s5 + $0xc] sm:$0xf]
        %v1623 = vld [vmem:[%s6] sm:$0x1]
        %v1625 = vlaneseq
        %v1626 = vshrl.u32 %v1625, 7
        %v1627 = vsub.s32 0, %v1626
        %v1628 = vrot.slane %v1623, %v1627
        %v1634 = vunpack.c.l.b16 %v1619
        %v1635 = vunpack.c.l.b16 %v1620
        %v1636 = vunpack.c.l.b16 %v1621
        %v1637 = vunpack.c.l.b16 %v1622
        %v1638 = vpack.c.b16 %v1635, %v1634
        %v1639 = vpack.c.b16 %v1637, %v1636
        %v1643 = vsel %vm371, %v1617, 0
        %v1646 = vsel %vm371, %v1618, 0
        %1648 = vmatprep.subr.bf16.mxu0 0
        %1649 = vmatpush1.bf16.msra.mxu0 %v1638
        %1650 = vmatprep.subr.bf16.mxu0 0
        %1651 = vmatpush1.bf16.msra.mxu0 %v1639
        %1652 = vmatprep.subr.bf16.mxu0 0
        %1653 = vmatpush1.bf16.msra.mxu0 0
        %1654 = vmatprep.subr.bf16.mxu0 0
        %1655 = vmatpush1.bf16.msra.mxu0 0
        %1656 = vmatprep.subr.bf16.mxu0 0
        %1657 = vmatpush1.bf16.msra.mxu0 0
        %1658 = vmatprep.subr.bf16.mxu0 0
        %1659 = vmatpush1.bf16.msra.mxu0 0
        %1660 = vmatprep.subr.bf16.mxu0 0
        %1661 = vmatpush1.bf16.msra.mxu0 0
        %1662 = vmatprep.subr.bf16.mxu0 0
        %1663 = vmatpush1.bf16.msra.mxu0 0
        %1664 = vmatprep.subr.bf16.mxu0 0
        %1665 = vmatpush1.bf16.msra.mxu0 0
        %1666 = vmatprep.subr.bf16.mxu0 0
        %1667 = vmatpush1.bf16.msra.mxu0 0
        %1668 = vmatprep.subr.bf16.mxu0 0
        %1669 = vmatpush1.bf16.msra.mxu0 0
        %1670 = vmatprep.subr.bf16.mxu0 0
        %1671 = vmatpush1.bf16.msra.mxu0 0
        %1672 = vmatprep.subr.bf16.mxu0 0
        %1673 = vmatpush1.bf16.msra.mxu0 0
        %1674 = vmatprep.subr.bf16.mxu0 0
        %1675 = vmatpush1.bf16.msra.mxu0 0
        %1676 = vmatprep.subr.bf16.mxu0 0
        %1677 = vmatpush1.bf16.msra.mxu0 0
        %1678 = vmatprep.subr.bf16.mxu0 0
        %1679 = vmatpush1.bf16.msra.mxu0 0
        %1680 = vmatprep.mubr.bf16.mxu0 0
        %1681 = vmatmul.mubr.bf16.gmra.mrb[0].mxu0 %v1643
        %v1682 = vpop.f32.mrb[0].mxu0
        %v1683 = vadd.f32 %v1628, %v1682
        %v1684 = vpop.f32.mrb[0].mxu0
        %v1685 = vpop.f32.mrb[0].mxu0
        %v1686 = vadd.f32 %v1628, %v1685
        %v1687 = vpop.f32.mrb[0].mxu0
        %1688 = vmatprep.mubr.bf16.mxu0 0
        %1689 = vmatmul.mubr.bf16.gmra.mrb[0].mxu0 %v1646
        %v1690 = vpop.f32.mrb[0].mxu0
        %v1691 = vadd.f32 %v1628, %v1690
        %v1692 = vpop.f32.mrb[0].mxu0
        %v1693 = vpop.f32.mrb[0].mxu0
        %v1694 = vadd.f32 %v1628, %v1693
        %v1695 = vpop.f32.mrb[0].mxu0
        %1696 = vdwg.mxu0
        %v1697 = vadd.f32 %v1683, %v367
        %v1698 = vadd.f32 %v1686, %v368
        %v1699 = vadd.f32 %v1691, %v369
        %v1700 = vadd.f32 %v1694, %v370
        %1701 = vst.msk [vmem:[%s355] sm:$0xff] %vm371, %v1697
        %1702 = vst.msk [vmem:[%s355 + $0x8] sm:$0xff] %vm371, %v1698
        %1703 = vst.msk [vmem:[%s355 + $0x10] sm:$0xff] %vm371, %v1699
        %1704 = vst.msk [vmem:[%s355 + $0x18] sm:$0xff] %vm371, %v1700
        %s1705 = sand.u32 %s190, 1
        %s1706 = scalar_lea.sflag [#allocation4], %s1705
        %s1707 = sand.u32 %s190, 1
        %s1708 = smul.addr %s1707, 32
        %s1709 = scalar_lea.vmem [#allocation8], %s1708
        %s1710 = sand.u32 %s216, 1
        %s1711 = scalar_lea.sflag [#allocation10], %s1710
        %s1712 = sand.u32 %s216, 1
        %s1713 = smul.addr %s1712, 128
        %s1714 = scalar_lea.vmem [#allocation9], %s1713
        // Predicated region
        $region61: #{tpu_custom_call.1} parent=47 // pred_check
          %p1715 = pneg %p200
        $region62: #{tpu_custom_call.1} parent=47 // pred_check_branch
          %1717 = sbr.rel (%p1715) target = $region64
        $region63: #{tpu_custom_call.1} parent=47 // pred_region
          %s1718 = smul.u32 2, %s30
          %s1720 = ssub.s32 512, 512
          %1721 = vsyncadd %s1706, %s1720
          %s1722 = smul.addr %s1718, 2
          %s1723 = smul.addr %s1722, 128
          %s1724 = scalar_lea.hbm %s7, %s1723
          %s1725 = sshll.u32 %s1709, 4
          %s1726 = int_to_ptr.vmem [resolvable:$true] %s1725
          %1731 = dma.vmem_to_hbm [thread:$0]  %s1726, 512, %s1724, %s1706, 128, 128, 8
        $region64: #{tpu_custom_call.1} parent=47 // pred_fallthru
          _
        // Predicated region
        $region65: #{tpu_custom_call.1} parent=47 // pred_check
          %p1732 = pneg %p226
        $region66: #{tpu_custom_call.1} parent=47 // pred_check_branch
          %1734 = sbr.rel (%p1732) target = $region68
        $region67: #{tpu_custom_call.1} parent=47 // pred_region
          %s1735 = smul.u32 2, %s30
          %s1737 = ssub.s32 2048, 2048
          %1738 = vsyncadd %s1711, %s1737
          %s1739 = smul.addr %s1735, 8
          %s1740 = smul.addr %s1739, 128
          %s1741 = scalar_lea.hbm %s8, %s1740
          %s1742 = sshll.u32 %s1714, 4
          %s1743 = int_to_ptr.vmem [resolvable:$true] %s1742
          %1748 = dma.vmem_to_hbm [thread:$0]  %s1743, 2048, %s1741, %s1711, 128, 128, 8
        $region68: #{tpu_custom_call.1} parent=47 // pred_fallthru
          _
      $region48: #{tpu_custom_call.1} parent=5 // pred_fallthru
        _
      %p1749 = scmp.le.s32.totalorder 2, %s25
      // Predicated region
      $region69: #{tpu_custom_call.1} parent=5 // pred_check
        %p1750 = pneg %p1749
      $region70: #{tpu_custom_call.1} parent=5 // pred_check_branch
        %1752 = sbr.rel (%p1750) target = $region72
      $region71: #{tpu_custom_call.1} parent=5 // pred_region
        %s1753 = ssub.s32 %s25, 2
        // Predicated region
        $region73: #{tpu_custom_call.1} parent=71 // pred_check
          %p1754 = pneg %p206
        $region74: #{tpu_custom_call.1} parent=71 // pred_check_branch
          %1756 = sbr.rel (%p1754) target = $region76
        $region75: #{tpu_custom_call.1} parent=71 // pred_region
          %s1757 = sand.u32 %s191, 1
          %s1758 = scalar_lea.sflag [#allocation4], %s1757
          %s1759 = sand.u32 %s191, 1
          %s1760 = smul.addr %s1759, 32
          %s1761 = scalar_lea.vmem [#allocation8], %s1760
          %1762 = dma.done %s1758, 512
        $region76: #{tpu_custom_call.1} parent=71 // pred_fallthru
          _
        // Predicated region
        $region77: #{tpu_custom_call.1} parent=71 // pred_check
          %p1763 = pneg %p232
        $region78: #{tpu_custom_call.1} parent=71 // pred_check_branch
          %1765 = sbr.rel (%p1763) target = $region80
        $region79: #{tpu_custom_call.1} parent=71 // pred_region
          %s1766 = sand.u32 %s217, 1
          %s1767 = scalar_lea.sflag [#allocation10], %s1766
          %s1768 = sand.u32 %s217, 1
          %s1769 = smul.addr %s1768, 128
          %s1770 = scalar_lea.vmem [#allocation9], %s1769
          %1771 = dma.done %s1767, 2048
        $region80: #{tpu_custom_call.1} parent=71 // pred_fallthru
          _
      $region72: #{tpu_custom_call.1} parent=5 // pred_fallthru
        _
    $region6: #{tpu_custom_call.1} parent=1 // loop_footer
      %s29 = sadd.s32 1, %s25
    $region7: #{tpu_custom_call.1} parent=1 // loop_footer_branch
      %24 = sbr.rel target = $region3
    $region8: #{tpu_custom_call.1} parent=1 // loop_exit
      _
    %1772 = vsyncpa [#allocation3], 1
    %s1773 = scalar_lea.sflag [#allocation3], 1
    %1774 = vsyncpa %s1773, 1
    %1775 = vsyncpa [#allocation6], 1
    %1776 = vsyncpa [#allocation4], 1
    %s1777 = scalar_lea.sflag [#allocation4], 1
    %1778 = vsyncpa %s1777, 1
    %1779 = vsyncpa [#allocation10], 1
    %s1780 = scalar_lea.sflag [#allocation10], 1
    %1781 = vsyncpa %s1780, 1

</llo_original>
